<compile_context>
chip_gen: v6e
topology: v6e:2x2x1
jax: 0.10.0
libtpu: 0.0.40
codegen_flags: <defaults>
</compile_context>

<pallas_src>
import functools

import jax
import jax.numpy as jnp
from jax.experimental import pallas as pl
from jax.experimental.pallas import tpu as pltpu

IN_DIM = 28 * 28   # 784
H1 = 512
H2 = 256
OUT = 10
OUT_PAD = 128      # fc3 output padded 10 -> 128 lanes (lane-dense, unmasked stores)


def mlp_kernel(x_ref, w1_ref, b1_ref, w2_ref, b2_ref, w3_ref, b3_ref, o_ref):
    # In-kernel f32 -> bf16 cast of the activations (VPU; free while MXU is the binding unit).
    x = x_ref[...].astype(jnp.bfloat16)
    # fc1 + ReLU : bf16 operands, f32 accumulation, f32 elementwise
    h1 = jnp.dot(x, w1_ref[...], preferred_element_type=jnp.float32)
    h1 = jnp.maximum(h1 + b1_ref[...], 0.0)
    # fc2 + ReLU
    h2 = jnp.dot(h1.astype(jnp.bfloat16), w2_ref[...],
                 preferred_element_type=jnp.float32)
    h2 = jnp.maximum(h2 + b2_ref[...], 0.0)
    # fc3 (logits, lane-dense padded to 128 columns)
    logits = jnp.dot(h2.astype(jnp.bfloat16), w3_ref[...],
                     preferred_element_type=jnp.float32)
    o_ref[...] = (logits + b3_ref[...]).astype(o_ref.dtype)


def prepare_params(params):
    """One-time weight prep: bf16 matmul operands + lane-dense fc3 padding.

    Call once after init / checkpoint load; do NOT rebuild per forward call.
    """
    w1, b1, w2, b2, w3, b3 = params
    w1b = w1.astype(jnp.bfloat16)                     # (784, 512)
    w2b = w2.astype(jnp.bfloat16)                     # (512, 256)
    w3p = jnp.zeros((H2, OUT_PAD), jnp.bfloat16).at[:, :OUT].set(w3.astype(jnp.bfloat16))
    b3p = jnp.zeros((1, OUT_PAD), jnp.float32).at[:, :OUT].set(b3.astype(jnp.float32))
    return (w1b, b1.astype(jnp.float32), w2b, b2.astype(jnp.float32), w3p, b3p)


def _choose_tile(B, tile_m):
    """Pick a batch tile: big enough to amortize per-step overhead, but keep grid >= 2
    when possible so both v7x TensorCores get work (single-TC v5e/v6e unaffected)."""
    if B >= 2 * tile_m:
        return tile_m
    if B >= 16:
        # Two (or more) grid steps: split the batch roughly in half, rounded to 8 sublanes.
        return max(8, (((B + 1) // 2 + 7) // 8) * 8)
    return max(8, ((B + 7) // 8) * 8)


@functools.partial(jax.jit, static_argnames=("tile_m",))
def mnist_classifier_forward(x_nchw, prepared, tile_m=512):
    """x_nchw: (B, 1, 28, 28) float32. prepared: output of prepare_params.
    Returns (B, 10) float32 logits."""
    w1b, b1, w2b, b2, w3p, b3p = prepared
    B = x_nchw.shape[0]
    x_flat = x_nchw.reshape(B, IN_DIM).astype(jnp.float32)  # nn.Flatten (row-major, NCHW)

    tm = _choose_tile(B, tile_m)
    B_pad = ((B + tm - 1) // tm) * tm
    if B_pad != B:
        x_flat = jnp.pad(x_flat, ((0, B_pad - B), (0, 0)))
    grid = (B_pad // tm,)

    # x/out tiles walk the batch grid; weights & biases use a constant block index so they
    # stay resident in VMEM across all grid steps (DMA'd once).
    x_spec = pl.BlockSpec((tm, IN_DIM), lambda i: (i, 0))
    out_spec = pl.BlockSpec((tm, OUT_PAD), lambda i: (i, 0))
    resident = lambda shape: pl.BlockSpec(shape, lambda i: (0, 0))

    flops = 2 * B_pad * (IN_DIM * H1 + H1 * H2 + H2 * OUT_PAD)
    bytes_accessed = (
        B_pad * IN_DIM * 4                                     # x (f32, cast in-kernel)
        + IN_DIM * H1 * 2 + H1 * H2 * 2 + H2 * OUT_PAD * 2     # weights (bf16)
        + (H1 + H2 + OUT_PAD) * 4                              # biases (f32)
        + B_pad * OUT_PAD * 4                                  # output (f32)
    )

    out = pl.pallas_call(
        mlp_kernel,
        out_shape=jax.ShapeDtypeStruct((B_pad, OUT_PAD), jnp.float32),
        grid=grid,
        in_specs=[
            x_spec,
            resident((IN_DIM, H1)),
            resident((1, H1)),
            resident((H1, H2)),
            resident((1, H2)),
            resident((H2, OUT_PAD)),
            resident((1, OUT_PAD)),
        ],
        out_specs=out_spec,
        compiler_params=pltpu.CompilerParams(
            dimension_semantics=("parallel",),
            vmem_limit_bytes=24 << 20,
        ),
        cost_estimate=pl.CostEstimate(
            flops=flops, transcendentals=0, bytes_accessed=bytes_accessed),
    )(x_flat, w1b, b1, w2b, b2, w3p, b3p)

    return out[:B, :OUT]


def init_params(key):
    """Deterministic init mimicking nn.Linear's uniform(-1/sqrt(fan_in), 1/sqrt(fan_in))."""
    def linear(k, fan_in, fan_out):
        kw, kb = jax.random.split(k)
        bound = 1.0 / jnp.sqrt(fan_in)
        w = jax.random.uniform(kw, (fan_in, fan_out), jnp.float32, -bound, bound)
        b = jax.random.uniform(kb, (1, fan_out), jnp.float32, -bound, bound)
        return w, b

    k1, k2, k3 = jax.random.split(key, 3)
    w1, b1 = linear(k1, IN_DIM, H1)
    w2, b2 = linear(k2, H1, H2)
    w3, b3 = linear(k3, H2, OUT)
    return (w1, b1, w2, b2, w3, b3)


def reference_forward_f32(x_nchw, params):
    """Pure-JAX f32 reference (PyTorch semantics)."""
    w1, b1, w2, b2, w3, b3 = params
    x = x_nchw.reshape(x_nchw.shape[0], -1)
    h = jnp.maximum(x @ w1 + b1, 0.0)
    h = jnp.maximum(h @ w2 + b2, 0.0)
    return h @ w3 + b3


def reference_forward_bf16(x_nchw, params):
    """Pure-JAX reference with the same bf16-operand / f32-accumulate recipe as the kernel."""
    w1, b1, w2, b2, w3, b3 = params
    x = x_nchw.reshape(x_nchw.shape[0], -1).astype(jnp.bfloat16)
    h = jnp.dot(x, w1.astype(jnp.bfloat16), preferred_element_type=jnp.float32)
    h = jnp.maximum(h + b1, 0.0)
    h = jnp.dot(h.astype(jnp.bfloat16), w2.astype(jnp.bfloat16),
                preferred_element_type=jnp.float32)
    h = jnp.maximum(h + b2, 0.0)
    out = jnp.dot(h.astype(jnp.bfloat16), w3.astype(jnp.bfloat16),
                  preferred_element_type=jnp.float32)
    return out + b3


if __name__ == "__main__":
    key = jax.random.PRNGKey(0)
    k_params, k_x = jax.random.split(key)

    params = init_params(k_params)
    prepared = prepare_params(params)               # one-time bf16 / lane-pad prep
    x = jax.random.normal(k_x, (8, 1, 28, 28), dtype=jnp.float32)

    logits = mnist_classifier_forward(x, prepared)
    logits = jax.block_until_ready(logits)

    assert logits.shape == (8, 10)

    # Tight check against a reference that uses the same bf16-operand recipe.
    ref_bf16 = reference_forward_bf16(x, params)
    assert jnp.allclose(logits, ref_bf16, atol=1e-2, rtol=1e-2)

    # Looser check against the full-f32 PyTorch-semantics reference.
    ref_f32 = reference_forward_f32(x, params)
    assert jnp.allclose(logits, ref_f32, atol=5e-2, rtol=5e-2)

    print("KERNEL_OK")
</pallas_src>

<mosaic_0001>
module attributes {stable_mosaic.version = 11 : i64} {
  func.func @mlp_kernel(%arg0: i32, %arg1: memref<8x784xf32, #tpu.memory_space<vmem>>, %arg2: memref<784x512xbf16, #tpu.memory_space<vmem>>, %arg3: memref<1x512xf32, #tpu.memory_space<vmem>>, %arg4: memref<512x256xbf16, #tpu.memory_space<vmem>>, %arg5: memref<1x256xf32, #tpu.memory_space<vmem>>, %arg6: memref<256x128xbf16, #tpu.memory_space<vmem>>, %arg7: memref<1x128xf32, #tpu.memory_space<vmem>>, %arg8: memref<8x128xf32, #tpu.memory_space<vmem>>) attributes {dimension_semantics = [#tpu.dimension_semantics<parallel>], iteration_bounds = array<i64: 1>, scalar_prefetch = 0 : i64, scratch_operands = 0 : i64, tpu.core_type = #tpu.core_type<tc>, window_params = [{transform_indices = @transform_0, window_bounds = array<i64: 8, 784>}, {pipeline_mode = #tpu.pipeline_mode<synchronous>, transform_indices = @transform_1, window_bounds = array<i64: 784, 512>}, {pipeline_mode = #tpu.pipeline_mode<synchronous>, transform_indices = @transform_2, window_bounds = array<i64: 1, 512>}, {pipeline_mode = #tpu.pipeline_mode<synchronous>, transform_indices = @transform_3, window_bounds = array<i64: 512, 256>}, {pipeline_mode = #tpu.pipeline_mode<synchronous>, transform_indices = @transform_4, window_bounds = array<i64: 1, 256>}, {pipeline_mode = #tpu.pipeline_mode<synchronous>, transform_indices = @transform_5, window_bounds = array<i64: 256, 128>}, {pipeline_mode = #tpu.pipeline_mode<synchronous>, transform_indices = @transform_6, window_bounds = array<i64: 1, 128>}, {transform_indices = @transform_7, window_bounds = array<i64: 8, 128>}]} {
    %c0 = arith.constant 0 : index
    %c0_0 = arith.constant 0 : index
    %0 = vector.load %arg1[%c0, %c0_0] : memref<8x784xf32, #tpu.memory_space<vmem>>, vector<8x784xf32>
    %1 = arith.truncf %0 : vector<8x784xf32> to vector<8x784xbf16>
    %c0_1 = arith.constant 0 : index
    %c0_2 = arith.constant 0 : index
    %2 = vector.load %arg2[%c0_1, %c0_2] : memref<784x512xbf16, #tpu.memory_space<vmem>>, vector<784x512xbf16>
    %cst = arith.constant dense<0.000000e+00> : vector<8x512xf32>
    %3 = tpu.matmul %1, %2, %cst {dimension_numbers = #tpu.dot_dimension_numbers<[1], [0], [0], [1], [0, 0, 1, 1], [], []>} : vector<8x784xbf16>, vector<784x512xbf16>, vector<8x512xf32> -> vector<8x512xf32>
    %c0_3 = arith.constant 0 : index
    %c0_4 = arith.constant 0 : index
    %4 = vector.load %arg3[%c0_3, %c0_4] : memref<1x512xf32, #tpu.memory_space<vmem>>, vector<1x512xf32>
    %5 = vector.broadcast %4 : vector<1x512xf32> to vector<8x512xf32>
    %6 = arith.addf %3, %5 : vector<8x512xf32>
    %cst_5 = arith.constant 0.000000e+00 : f32
    %7 = vector.broadcast %cst_5 : f32 to vector<8x512xf32>
    %8 = arith.maximumf %6, %7 : vector<8x512xf32>
    %9 = arith.truncf %8 : vector<8x512xf32> to vector<8x512xbf16>
    %c0_6 = arith.constant 0 : index
    %c0_7 = arith.constant 0 : index
    %10 = vector.load %arg4[%c0_6, %c0_7] : memref<512x256xbf16, #tpu.memory_space<vmem>>, vector<512x256xbf16>
    %cst_8 = arith.constant dense<0.000000e+00> : vector<8x256xf32>
    %11 = tpu.matmul %9, %10, %cst_8 {dimension_numbers = #tpu.dot_dimension_numbers<[1], [0], [0], [1], [0, 0, 1, 1], [], []>} : vector<8x512xbf16>, vector<512x256xbf16>, vector<8x256xf32> -> vector<8x256xf32>
    %c0_9 = arith.constant 0 : index
    %c0_10 = arith.constant 0 : index
    %12 = vector.load %arg5[%c0_9, %c0_10] : memref<1x256xf32, #tpu.memory_space<vmem>>, vector<1x256xf32>
    %13 = vector.broadcast %12 : vector<1x256xf32> to vector<8x256xf32>
    %14 = arith.addf %11, %13 : vector<8x256xf32>
    %cst_11 = arith.constant 0.000000e+00 : f32
    %15 = vector.broadcast %cst_11 : f32 to vector<8x256xf32>
    %16 = arith.maximumf %14, %15 : vector<8x256xf32>
    %17 = arith.truncf %16 : vector<8x256xf32> to vector<8x256xbf16>
    %c0_12 = arith.constant 0 : index
    %c0_13 = arith.constant 0 : index
    %18 = vector.load %arg6[%c0_12, %c0_13] : memref<256x128xbf16, #tpu.memory_space<vmem>>, vector<256x128xbf16>
    %cst_14 = arith.constant dense<0.000000e+00> : vector<8x128xf32>
    %19 = tpu.matmul %17, %18, %cst_14 {dimension_numbers = #tpu.dot_dimension_numbers<[1], [0], [0], [1], [0, 0, 1, 1], [], []>} : vector<8x256xbf16>, vector<256x128xbf16>, vector<8x128xf32> -> vector<8x128xf32>
    %c0_15 = arith.constant 0 : index
    %c0_16 = arith.constant 0 : index
    %20 = vector.load %arg7[%c0_15, %c0_16] : memref<1x128xf32, #tpu.memory_space<vmem>>, vector<1x128xf32>
    %21 = vector.broadcast %20 : vector<1x128xf32> to vector<8x128xf32>
    %22 = arith.addf %19, %21 : vector<8x128xf32>
    %c0_17 = arith.constant 0 : index
    %c0_18 = arith.constant 0 : index
    %23 = vector.load %arg8[%c0_17, %c0_18] : memref<8x128xf32, #tpu.memory_space<vmem>>, vector<8x128xf32>
    tpu.vector_store %arg8[%c0_17, %c0_18], %22 {strides = array<i32>} : memref<8x128xf32, #tpu.memory_space<vmem>>, vector<8x128xf32>,
    return
  }
  func.func @transform_0(%arg0: i32) -> (i32, i32) {
    %c0_i32 = arith.constant 0 : i32
    %c0_i32_0 = arith.constant 0 : i32
    return %arg0, %c0_i32 : i32, i32
  }
  func.func @transform_1(%arg0: i32) -> (i32, i32) {
    %c0_i32 = arith.constant 0 : i32
    %c0_i32_0 = arith.constant 0 : i32
    %c0_i32_1 = arith.constant 0 : i32
    return %c0_i32, %c0_i32_0 : i32, i32
  }
  func.func @transform_2(%arg0: i32) -> (i32, i32) {
    %c0_i32 = arith.constant 0 : i32
    %c0_i32_0 = arith.constant 0 : i32
    %c0_i32_1 = arith.constant 0 : i32
    return %c0_i32, %c0_i32_0 : i32, i32
  }
  func.func @transform_3(%arg0: i32) -> (i32, i32) {
    %c0_i32 = arith.constant 0 : i32
    %c0_i32_0 = arith.constant 0 : i32
    %c0_i32_1 = arith.constant 0 : i32
    return %c0_i32, %c0_i32_0 : i32, i32
  }
  func.func @transform_4(%arg0: i32) -> (i32, i32) {
    %c0_i32 = arith.constant 0 : i32
    %c0_i32_0 = arith.constant 0 : i32
    %c0_i32_1 = arith.constant 0 : i32
    return %c0_i32, %c0_i32_0 : i32, i32
  }
  func.func @transform_5(%arg0: i32) -> (i32, i32) {
    %c0_i32 = arith.constant 0 : i32
    %c0_i32_0 = arith.constant 0 : i32
    %c0_i32_1 = arith.constant 0 : i32
    return %c0_i32, %c0_i32_0 : i32, i32
  }
  func.func @transform_6(%arg0: i32) -> (i32, i32) {
    %c0_i32 = arith.constant 0 : i32
    %c0_i32_0 = arith.constant 0 : i32
    %c0_i32_1 = arith.constant 0 : i32
    return %c0_i32, %c0_i32_0 : i32, i32
  }
  func.func @transform_7(%arg0: i32) -> (i32, i32) {
    %c0_i32 = arith.constant 0 : i32
    %c0_i32_0 = arith.constant 0 : i32
    return %arg0, %c0_i32 : i32, i32
  }
}

</mosaic_0001>

<llo_original>
// kernel: mnist_classifier_forward.1
$region0: #{mnist_classifier_forward.1}
  #allocation0 [shape = 'u32[]', space=smem, size = 0x4, offset = 0x4, fixed_abs, tag = 'smem constant byte address 0x4 - core index']
  #allocation1 [shape = 'u32[144,128]{1,0:T(1,128)}', space=vmem, size = 0x12000, scoped, tag = 'internal scratch']
  %s0 = inlined_call_operand.vmem [shape: f32[8,784], index: 0, kind: input, shape index: {}]
  %s1 = inlined_call_operand.hbm [shape: bf16[784,512], index: 1, kind: input, shape index: {}]
  %s2 = inlined_call_operand.vmem [shape: f32[1,512], index: 2, kind: input, shape index: {}]
  %s3 = inlined_call_operand.vmem [shape: bf16[512,256], index: 3, kind: input, shape index: {}]
  %s4 = inlined_call_operand.vmem [shape: f32[1,256], index: 4, kind: input, shape index: {}]
  %s5 = inlined_call_operand.vmem [shape: bf16[256,128], index: 5, kind: input, shape index: {}]
  %s6 = inlined_call_operand.vmem [shape: f32[1,128], index: 6, kind: input, shape index: {}]
  %s7 = inlined_call_operand.hbm [shape: f32[8,128], index: 7, kind: output, shape index: {}]
  %s8 = sld [smem:[#allocation0]]
  $region42: #{mnist_classifier_forward.1} parent=0
    _
  %s10 = ssub.s32 1, %s8
  %s11 = scalar_select 0, %s10, %s8
  $region1: #{mnist_classifier_forward.1} parent=0
    #allocation2 [shape = 'u8[802816]{0}', space=vmem, size = 0xc4000, scoped, tag = 'input window, operand 1, single buffered']
    #allocation3 [shape = 's32[1]{0}', space=sflag, size = 0x4, scoped, tag = 'scoped memory for mnist_classifier_forward.1']
    #allocation4 [shape = 's32[1]{0}', space=sflag, size = 0x4, scoped, tag = 'scoped memory for mnist_classifier_forward.1']
    #allocation5 [shape = 'u8[4096]{0}', space=vmem, size = 0x1000, scoped, tag = 'output window, operand 0, single buffered']
    %12 = vsyncpa [#allocation3], 0
    %13 = vsyncpa [#allocation4], 0
    // Predicated region
    $region2: #{mnist_classifier_forward.1} parent=1 // pred_check
      _
    $region3: #{mnist_classifier_forward.1} parent=1 // pred_check_branch
      %15 = sbr.rel (0) target = $region5
    $region4: #{mnist_classifier_forward.1} parent=1 // pred_region
      _
    $region5: #{mnist_classifier_forward.1} parent=1 // pred_fallthru
      _
    // Predicated region
    $region6: #{mnist_classifier_forward.1} parent=1 // pred_check
      _
    $region7: #{mnist_classifier_forward.1} parent=1 // pred_check_branch
      %17 = sbr.rel (0) target = $region9
    $region8: #{mnist_classifier_forward.1} parent=1 // pred_region
      %s19 = ssub.s32 25088, 25088
      %20 = vsyncadd [#allocation3], %s19
      %s21 = sshll.u32 [#allocation2], 4
      %s22 = int_to_ptr.vmem [resolvable:$true] %s21
      %27 = dma.hbm_to_vmem [thread:$0]  %s1, 25088, %s22, [#allocation3], 256, 256, 16
    $region9: #{mnist_classifier_forward.1} parent=1 // pred_fallthru
      _
    // Predicated region
    $region10: #{mnist_classifier_forward.1} parent=1 // pred_check
      _
    $region11: #{mnist_classifier_forward.1} parent=1 // pred_check_branch
      %29 = sbr.rel (0) target = $region13
    $region12: #{mnist_classifier_forward.1} parent=1 // pred_region
      _
    $region13: #{mnist_classifier_forward.1} parent=1 // pred_fallthru
      _
    // Predicated region
    $region14: #{mnist_classifier_forward.1} parent=1 // pred_check
      _
    $region15: #{mnist_classifier_forward.1} parent=1 // pred_check_branch
      %31 = sbr.rel (0) target = $region17
    $region16: #{mnist_classifier_forward.1} parent=1 // pred_region
      _
    $region17: #{mnist_classifier_forward.1} parent=1 // pred_fallthru
      _
    // Predicated region
    $region18: #{mnist_classifier_forward.1} parent=1 // pred_check
      _
    $region19: #{mnist_classifier_forward.1} parent=1 // pred_check_branch
      %33 = sbr.rel (0) target = $region21
    $region20: #{mnist_classifier_forward.1} parent=1 // pred_region
      _
    $region21: #{mnist_classifier_forward.1} parent=1 // pred_fallthru
      _
    // Predicated region
    $region22: #{mnist_classifier_forward.1} parent=1 // pred_check
      _
    $region23: #{mnist_classifier_forward.1} parent=1 // pred_check_branch
      %35 = sbr.rel (0) target = $region25
    $region24: #{mnist_classifier_forward.1} parent=1 // pred_region
      _
    $region25: #{mnist_classifier_forward.1} parent=1 // pred_fallthru
      _
    // Predicated region
    $region26: #{mnist_classifier_forward.1} parent=1 // pred_check
      _
    $region27: #{mnist_classifier_forward.1} parent=1 // pred_check_branch
      %37 = sbr.rel (0) target = $region29
    $region28: #{mnist_classifier_forward.1} parent=1 // pred_region
      _
    $region29: #{mnist_classifier_forward.1} parent=1 // pred_fallthru
      _
    // Predicated region
    $region30: #{mnist_classifier_forward.1} parent=1 // pred_check
      _
    $region31: #{mnist_classifier_forward.1} parent=1 // pred_check_branch
      %39 = sbr.rel (0) target = $region33
    $region32: #{mnist_classifier_forward.1} parent=1 // pred_region
      %40 = dma.done [#allocation3], 25088
    $region33: #{mnist_classifier_forward.1} parent=1 // pred_fallthru
      _
    %v42 = vld [vmem:[%s0] sm:$0xff]
    %v43 = vld [vmem:[%s0 + $0x8] sm:$0xff]
    %v44 = vld [vmem:[%s0 + $0x10] sm:$0xff]
    %v45 = vld [vmem:[%s0 + $0x18] sm:$0xff]
    %v46 = vld [vmem:[%s0 + $0x20] sm:$0xff]
    %v47 = vld [vmem:[%s0 + $0x28] sm:$0xff]
    %v48 = vld [vmem:[%s0 + $0x30] sm:$0xff]
    %v49 = vpack.c.bf16 %v42, %v42
    %v50 = vpack.c.bf16 %v43, %v43
    %v51 = vpack.c.bf16 %v44, %v44
    %v52 = vpack.c.bf16 %v45, %v45
    %v53 = vpack.c.bf16 %v46, %v46
    %v54 = vpack.c.bf16 %v47, %v47
    %v55 = vpack.c.bf16 %v48, %v48
    %v56 = vld [vmem:[#allocation2] sm:$0xff]
    %v57 = vld [vmem:[#allocation2 + $0x8] sm:$0xff]
    %v58 = vld [vmem:[#allocation2 + $0x10] sm:$0xff]
    %v59 = vld [vmem:[#allocation2 + $0x18] sm:$0xff]
    %v60 = vld [vmem:[#allocation2 + $0x20] sm:$0xff]
    %v61 = vld [vmem:[#allocation2 + $0x28] sm:$0xff]
    %v62 = vld [vmem:[#allocation2 + $0x30] sm:$0xff]
    %v63 = vld [vmem:[#allocation2 + $0x38] sm:$0xff]
    %v64 = vld [vmem:[#allocation2 + $0x40] sm:$0xff]
    %v65 = vld [vmem:[#allocation2 + $0x48] sm:$0xff]
    %v66 = vld [vmem:[#allocation2 + $0x50] sm:$0xff]
    %v67 = vld [vmem:[#allocation2 + $0x58] sm:$0xff]
    %v68 = vld [vmem:[#allocation2 + $0x60] sm:$0xff]
    %v69 = vld [vmem:[#allocation2 + $0x68] sm:$0xff]
    %v70 = vld [vmem:[#allocation2 + $0x70] sm:$0xff]
    %v71 = vld [vmem:[#allocation2 + $0x78] sm:$0xff]
    %v72 = vld [vmem:[#allocation2 + $0x80] sm:$0xff]
    %v73 = vld [vmem:[#allocation2 + $0x88] sm:$0xff]
    %v74 = vld [vmem:[#allocation2 + $0x90] sm:$0xff]
    %v75 = vld [vmem:[#allocation2 + $0x98] sm:$0xff]
    %v76 = vld [vmem:[#allocation2 + $0xa0] sm:$0xff]
    %v77 = vld [vmem:[#allocation2 + $0xa8] sm:$0xff]
    %v78 = vld [vmem:[#allocation2 + $0xb0] sm:$0xff]
    %v79 = vld [vmem:[#allocation2 + $0xb8] sm:$0xff]
    %v80 = vld [vmem:[#allocation2 + $0xc0] sm:$0xff]
    %v81 = vld [vmem:[#allocation2 + $0xc8] sm:$0xff]
    %v82 = vld [vmem:[#allocation2 + $0xd0] sm:$0xff]
    %v83 = vld [vmem:[#allocation2 + $0xd8] sm:$0xff]
    %v84 = vld [vmem:[#allocation2 + $0xe0] sm:$0xff]
    %v85 = vld [vmem:[#allocation2 + $0xe8] sm:$0xff]
    %v86 = vld [vmem:[#allocation2 + $0xf0] sm:$0xff]
    %v87 = vld [vmem:[#allocation2 + $0xf8] sm:$0xff]
    %v88 = vld [vmem:[#allocation2 + $0x100] sm:$0xff]
    %v89 = vld [vmem:[#allocation2 + $0x108] sm:$0xff]
    %v90 = vld [vmem:[#allocation2 + $0x110] sm:$0xff]
    %v91 = vld [vmem:[#allocation2 + $0x118] sm:$0xff]
    %v92 = vld [vmem:[#allocation2 + $0x120] sm:$0xff]
    %v93 = vld [vmem:[#allocation2 + $0x128] sm:$0xff]
    %v94 = vld [vmem:[#allocation2 + $0x130] sm:$0xff]
    %v95 = vld [vmem:[#allocation2 + $0x138] sm:$0xff]
    %v96 = vld [vmem:[#allocation2 + $0x140] sm:$0xff]
    %v97 = vld [vmem:[#allocation2 + $0x148] sm:$0xff]
    %v98 = vld [vmem:[#allocation2 + $0x150] sm:$0xff]
    %v99 = vld [vmem:[#allocation2 + $0x158] sm:$0xff]
    %v100 = vld [vmem:[#allocation2 + $0x160] sm:$0xff]
    %v101 = vld [vmem:[#allocation2 + $0x168] sm:$0xff]
    %v102 = vld [vmem:[#allocation2 + $0x170] sm:$0xff]
    %v103 = vld [vmem:[#allocation2 + $0x178] sm:$0xff]
    %v104 = vld [vmem:[#allocation2 + $0x180] sm:$0xff]
    %v105 = vld [vmem:[#allocation2 + $0x188] sm:$0xff]
    %v106 = vld [vmem:[#allocation2 + $0x190] sm:$0xff]
    %v107 = vld [vmem:[#allocation2 + $0x198] sm:$0xff]
    %v108 = vld [vmem:[#allocation2 + $0x1a0] sm:$0xff]
    %v109 = vld [vmem:[#allocation2 + $0x1a8] sm:$0xff]
    %v110 = vld [vmem:[#allocation2 + $0x1b0] sm:$0xff]
    %v111 = vld [vmem:[#allocation2 + $0x1b8] sm:$0xff]
    %v112 = vld [vmem:[#allocation2 + $0x1c0] sm:$0xff]
    %v113 = vld [vmem:[#allocation2 + $0x1c8] sm:$0xff]
    %v114 = vld [vmem:[#allocation2 + $0x1d0] sm:$0xff]
    %v115 = vld [vmem:[#allocation2 + $0x1d8] sm:$0xff]
    %v116 = vld [vmem:[#allocation2 + $0x1e0] sm:$0xff]
    %v117 = vld [vmem:[#allocation2 + $0x1e8] sm:$0xff]
    %v118 = vld [vmem:[#allocation2 + $0x1f0] sm:$0xff]
    %v119 = vld [vmem:[#allocation2 + $0x1f8] sm:$0xff]
    %v120 = vld [vmem:[#allocation2 + $0x200] sm:$0xff]
    %v121 = vld [vmem:[#allocation2 + $0x208] sm:$0xff]
    %v122 = vld [vmem:[#allocation2 + $0x210] sm:$0xff]
    %v123 = vld [vmem:[#allocation2 + $0x218] sm:$0xff]
    %v124 = vld [vmem:[#allocation2 + $0x220] sm:$0xff]
    %v125 = vld [vmem:[#allocation2 + $0x228] sm:$0xff]
    %v126 = vld [vmem:[#allocation2 + $0x230] sm:$0xff]
    %v127 = vld [vmem:[#allocation2 + $0x238] sm:$0xff]
    %v128 = vld [vmem:[#allocation2 + $0x240] sm:$0xff]
    %v129 = vld [vmem:[#allocation2 + $0x248] sm:$0xff]
    %v130 = vld [vmem:[#allocation2 + $0x250] sm:$0xff]
    %v131 = vld [vmem:[#allocation2 + $0x258] sm:$0xff]
    %v132 = vld [vmem:[#allocation2 + $0x260] sm:$0xff]
    %v133 = vld [vmem:[#allocation2 + $0x268] sm:$0xff]
    %v134 = vld [vmem:[#allocation2 + $0x270] sm:$0xff]
    %v135 = vld [vmem:[#allocation2 + $0x278] sm:$0xff]
    %v136 = vld [vmem:[#allocation2 + $0x280] sm:$0xff]
    %v137 = vld [vmem:[#allocation2 + $0x288] sm:$0xff]
    %v138 = vld [vmem:[#allocation2 + $0x290] sm:$0xff]
    %v139 = vld [vmem:[#allocation2 + $0x298] sm:$0xff]
    %v140 = vld [vmem:[#allocation2 + $0x2a0] sm:$0xff]
    %v141 = vld [vmem:[#allocation2 + $0x2a8] sm:$0xff]
    %v142 = vld [vmem:[#allocation2 + $0x2b0] sm:$0xff]
    %v143 = vld [vmem:[#allocation2 + $0x2b8] sm:$0xff]
    %v144 = vld [vmem:[#allocation2 + $0x2c0] sm:$0xff]
    %v145 = vld [vmem:[#allocation2 + $0x2c8] sm:$0xff]
    %v146 = vld [vmem:[#allocation2 + $0x2d0] sm:$0xff]
    %v147 = vld [vmem:[#allocation2 + $0x2d8] sm:$0xff]
    %v148 = vld [vmem:[#allocation2 + $0x2e0] sm:$0xff]
    %v149 = vld [vmem:[#allocation2 + $0x2e8] sm:$0xff]
    %v150 = vld [vmem:[#allocation2 + $0x2f0] sm:$0xff]
    %v151 = vld [vmem:[#allocation2 + $0x2f8] sm:$0xff]
    %v152 = vld [vmem:[#allocation2 + $0x300] sm:$0xff]
    %v153 = vld [vmem:[#allocation2 + $0x308] sm:$0xff]
    %v154 = vld [vmem:[#allocation2 + $0x310] sm:$0xff]
    %v155 = vld [vmem:[#allocation2 + $0x318] sm:$0xff]
    %v156 = vld [vmem:[#allocation2 + $0x320] sm:$0xff]
    %v157 = vld [vmem:[#allocation2 + $0x328] sm:$0xff]
    %v158 = vld [vmem:[#allocation2 + $0x330] sm:$0xff]
    %v159 = vld [vmem:[#allocation2 + $0x338] sm:$0xff]
    %v160 = vld [vmem:[#allocation2 + $0x340] sm:$0xff]
    %v161 = vld [vmem:[#allocation2 + $0x348] sm:$0xff]
    %v162 = vld [vmem:[#allocation2 + $0x350] sm:$0xff]
    %v163 = vld [vmem:[#allocation2 + $0x358] sm:$0xff]
    %v164 = vld [vmem:[#allocation2 + $0x360] sm:$0xff]
    %v165 = vld [vmem:[#allocation2 + $0x368] sm:$0xff]
    %v166 = vld [vmem:[#allocation2 + $0x370] sm:$0xff]
    %v167 = vld [vmem:[#allocation2 + $0x378] sm:$0xff]
    %v168 = vld [vmem:[#allocation2 + $0x380] sm:$0xff]
    %v169 = vld [vmem:[#allocation2 + $0x388] sm:$0xff]
    %v170 = vld [vmem:[#allocation2 + $0x390] sm:$0xff]
    %v171 = vld [vmem:[#allocation2 + $0x398] sm:$0xff]
    %v172 = vld [vmem:[#allocation2 + $0x3a0] sm:$0xff]
    %v173 = vld [vmem:[#allocation2 + $0x3a8] sm:$0xff]
    %v174 = vld [vmem:[#allocation2 + $0x3b0] sm:$0xff]
    %v175 = vld [vmem:[#allocation2 + $0x3b8] sm:$0xff]
    %v176 = vld [vmem:[#allocation2 + $0x3c0] sm:$0xff]
    %v177 = vld [vmem:[#allocation2 + $0x3c8] sm:$0xff]
    %v178 = vld [vmem:[#allocation2 + $0x3d0] sm:$0xff]
    %v179 = vld [vmem:[#allocation2 + $0x3d8] sm:$0xff]
    %v180 = vld [vmem:[#allocation2 + $0x3e0] sm:$0xff]
    %v181 = vld [vmem:[#allocation2 + $0x3e8] sm:$0xff]
    %v182 = vld [vmem:[#allocation2 + $0x3f0] sm:$0xff]
    %v183 = vld [vmem:[#allocation2 + $0x3f8] sm:$0xff]
    %v184 = vld [vmem:[#allocation2 + $0x400] sm:$0xff]
    %v185 = vld [vmem:[#allocation2 + $0x408] sm:$0xff]
    %v186 = vld [vmem:[#allocation2 + $0x410] sm:$0xff]
    %v187 = vld [vmem:[#allocation2 + $0x418] sm:$0xff]
    %v188 = vld [vmem:[#allocation2 + $0x420] sm:$0xff]
    %v189 = vld [vmem:[#allocation2 + $0x428] sm:$0xff]
    %v190 = vld [vmem:[#allocation2 + $0x430] sm:$0xff]
    %v191 = vld [vmem:[#allocation2 + $0x438] sm:$0xff]
    %v192 = vld [vmem:[#allocation2 + $0x440] sm:$0xff]
    %v193 = vld [vmem:[#allocation2 + $0x448] sm:$0xff]
    %v194 = vld [vmem:[#allocation2 + $0x450] sm:$0xff]
    %v195 = vld [vmem:[#allocation2 + $0x458] sm:$0xff]
    %v196 = vld [vmem:[#allocation2 + $0x460] sm:$0xff]
    %v197 = vld [vmem:[#allocation2 + $0x468] sm:$0xff]
    %v198 = vld [vmem:[#allocation2 + $0x470] sm:$0xff]
    %v199 = vld [vmem:[#allocation2 + $0x478] sm:$0xff]
    %v200 = vld [vmem:[#allocation2 + $0x480] sm:$0xff]
    %v201 = vld [vmem:[#allocation2 + $0x488] sm:$0xff]
    %v202 = vld [vmem:[#allocation2 + $0x490] sm:$0xff]
    %v203 = vld [vmem:[#allocation2 + $0x498] sm:$0xff]
    %v204 = vld [vmem:[#allocation2 + $0x4a0] sm:$0xff]
    %v205 = vld [vmem:[#allocation2 + $0x4a8] sm:$0xff]
    %v206 = vld [vmem:[#allocation2 + $0x4b0] sm:$0xff]
    %v207 = vld [vmem:[#allocation2 + $0x4b8] sm:$0xff]
    %v208 = vld [vmem:[#allocation2 + $0x4c0] sm:$0xff]
    %v209 = vld [vmem:[#allocation2 + $0x4c8] sm:$0xff]
    %v210 = vld [vmem:[#allocation2 + $0x4d0] sm:$0xff]
    %v211 = vld [vmem:[#allocation2 + $0x4d8] sm:$0xff]
    %v212 = vld [vmem:[#allocation2 + $0x4e0] sm:$0xff]
    %v213 = vld [vmem:[#allocation2 + $0x4e8] sm:$0xff]
    %v214 = vld [vmem:[#allocation2 + $0x4f0] sm:$0xff]
    %v215 = vld [vmem:[#allocation2 + $0x4f8] sm:$0xff]
    %v216 = vld [vmem:[#allocation2 + $0x500] sm:$0xff]
    %v217 = vld [vmem:[#allocation2 + $0x508] sm:$0xff]
    %v218 = vld [vmem:[#allocation2 + $0x510] sm:$0xff]
    %v219 = vld [vmem:[#allocation2 + $0x518] sm:$0xff]
    %v220 = vld [vmem:[#allocation2 + $0x520] sm:$0xff]
    %v221 = vld [vmem:[#allocation2 + $0x528] sm:$0xff]
    %v222 = vld [vmem:[#allocation2 + $0x530] sm:$0xff]
    %v223 = vld [vmem:[#allocation2 + $0x538] sm:$0xff]
    %v224 = vld [vmem:[#allocation2 + $0x540] sm:$0xff]
    %v225 = vld [vmem:[#allocation2 + $0x548] sm:$0xff]
    %v226 = vld [vmem:[#allocation2 + $0x550] sm:$0xff]
    %v227 = vld [vmem:[#allocation2 + $0x558] sm:$0xff]
    %v228 = vld [vmem:[#allocation2 + $0x560] sm:$0xff]
    %v229 = vld [vmem:[#allocation2 + $0x568] sm:$0xff]
    %v230 = vld [vmem:[#allocation2 + $0x570] sm:$0xff]
    %v231 = vld [vmem:[#allocation2 + $0x578] sm:$0xff]
    %v232 = vld [vmem:[#allocation2 + $0x580] sm:$0xff]
    %v233 = vld [vmem:[#allocation2 + $0x588] sm:$0xff]
    %v234 = vld [vmem:[#allocation2 + $0x590] sm:$0xff]
    %v235 = vld [vmem:[#allocation2 + $0x598] sm:$0xff]
    %v236 = vld [vmem:[#allocation2 + $0x5a0] sm:$0xff]
    %v237 = vld [vmem:[#allocation2 + $0x5a8] sm:$0xff]
    %v238 = vld [vmem:[#allocation2 + $0x5b0] sm:$0xff]
    %v239 = vld [vmem:[#allocation2 + $0x5b8] sm:$0xff]
    %v240 = vld [vmem:[#allocation2 + $0x5c0] sm:$0xff]
    %v241 = vld [vmem:[#allocation2 + $0x5c8] sm:$0xff]
    %v242 = vld [vmem:[#allocation2 + $0x5d0] sm:$0xff]
    %v243 = vld [vmem:[#allocation2 + $0x5d8] sm:$0xff]
    %v244 = vld [vmem:[#allocation2 + $0x5e0] sm:$0xff]
    %v245 = vld [vmem:[#allocation2 + $0x5e8] sm:$0xff]
    %v246 = vld [vmem:[#allocation2 + $0x5f0] sm:$0xff]
    %v247 = vld [vmem:[#allocation2 + $0x5f8] sm:$0xff]
    %v248 = vld [vmem:[#allocation2 + $0x600] sm:$0xff]
    %v249 = vld [vmem:[#allocation2 + $0x608] sm:$0xff]
    %v250 = vld [vmem:[#allocation2 + $0x610] sm:$0xff]
    %v251 = vld [vmem:[#allocation2 + $0x618] sm:$0xff]
    %v252 = vld [vmem:[%s2] sm:$0xf]
    %v254 = vlaneseq
    %v255 = vshrl.u32 %v254, 7
    %v256 = vsub.s32 0, %v255
    %v257 = vrot.slane %v252, %v256
    %v258 = vlaneseq
    %v259 = vshrl.u32 %v258, 7
    %v260 = vsub.s32 1, %v259
    %v261 = vrot.slane %v252, %v260
    %v262 = vlaneseq
    %v263 = vshrl.u32 %v262, 7
    %v264 = vsub.s32 2, %v263
    %v265 = vrot.slane %v252, %v264
    %v266 = vlaneseq
    %v267 = vshrl.u32 %v266, 7
    %v268 = vsub.s32 3, %v267
    %v269 = vrot.slane %v252, %v268
    %v470 = vunpack.c.l.b16 %v56
    %v471 = vunpack.c.h.b16 %v56
    %v472 = vunpack.c.l.b16 %v57
    %v473 = vunpack.c.h.b16 %v57
    %v474 = vunpack.c.l.b16 %v58
    %v475 = vunpack.c.h.b16 %v58
    %v476 = vunpack.c.l.b16 %v59
    %v477 = vunpack.c.h.b16 %v59
    %v478 = vunpack.c.l.b16 %v60
    %v479 = vunpack.c.h.b16 %v60
    %v480 = vunpack.c.l.b16 %v61
    %v481 = vunpack.c.h.b16 %v61
    %v482 = vunpack.c.l.b16 %v62
    %v483 = vunpack.c.h.b16 %v62
    %v484 = vunpack.c.l.b16 %v63
    %v485 = vunpack.c.h.b16 %v63
    %v486 = vunpack.c.l.b16 %v64
    %v487 = vunpack.c.h.b16 %v64
    %v488 = vunpack.c.l.b16 %v65
    %v489 = vunpack.c.h.b16 %v65
    %v490 = vunpack.c.l.b16 %v66
    %v491 = vunpack.c.h.b16 %v66
    %v492 = vunpack.c.l.b16 %v67
    %v493 = vunpack.c.h.b16 %v67
    %v494 = vunpack.c.l.b16 %v68
    %v495 = vunpack.c.h.b16 %v68
    %v496 = vunpack.c.l.b16 %v69
    %v497 = vunpack.c.h.b16 %v69
    %v498 = vunpack.c.l.b16 %v70
    %v499 = vunpack.c.h.b16 %v70
    %v500 = vunpack.c.l.b16 %v71
    %v501 = vunpack.c.h.b16 %v71
    %v502 = vunpack.c.l.b16 %v72
    %v503 = vunpack.c.h.b16 %v72
    %v504 = vunpack.c.l.b16 %v73
    %v505 = vunpack.c.h.b16 %v73
    %v506 = vunpack.c.l.b16 %v74
    %v507 = vunpack.c.h.b16 %v74
    %v508 = vunpack.c.l.b16 %v75
    %v509 = vunpack.c.h.b16 %v75
    %v510 = vunpack.c.l.b16 %v76
    %v511 = vunpack.c.h.b16 %v76
    %v512 = vunpack.c.l.b16 %v77
    %v513 = vunpack.c.h.b16 %v77
    %v514 = vunpack.c.l.b16 %v78
    %v515 = vunpack.c.h.b16 %v78
    %v516 = vunpack.c.l.b16 %v79
    %v517 = vunpack.c.h.b16 %v79
    %v518 = vunpack.c.l.b16 %v80
    %v519 = vunpack.c.h.b16 %v80
    %v520 = vunpack.c.l.b16 %v81
    %v521 = vunpack.c.h.b16 %v81
    %v522 = vunpack.c.l.b16 %v82
    %v523 = vunpack.c.h.b16 %v82
    %v524 = vunpack.c.l.b16 %v83
    %v525 = vunpack.c.h.b16 %v83
    %v526 = vunpack.c.l.b16 %v84
    %v527 = vunpack.c.h.b16 %v84
    %v528 = vunpack.c.l.b16 %v85
    %v529 = vunpack.c.h.b16 %v85
    %v530 = vunpack.c.l.b16 %v86
    %v531 = vunpack.c.h.b16 %v86
    %v532 = vunpack.c.l.b16 %v87
    %v533 = vunpack.c.h.b16 %v87
    %v534 = vunpack.c.l.b16 %v88
    %v535 = vunpack.c.h.b16 %v88
    %v536 = vunpack.c.l.b16 %v89
    %v537 = vunpack.c.h.b16 %v89
    %v538 = vunpack.c.l.b16 %v90
    %v539 = vunpack.c.h.b16 %v90
    %v540 = vunpack.c.l.b16 %v91
    %v541 = vunpack.c.h.b16 %v91
    %v542 = vunpack.c.l.b16 %v92
    %v543 = vunpack.c.h.b16 %v92
    %v544 = vunpack.c.l.b16 %v93
    %v545 = vunpack.c.h.b16 %v93
    %v546 = vunpack.c.l.b16 %v94
    %v547 = vunpack.c.h.b16 %v94
    %v548 = vunpack.c.l.b16 %v95
    %v549 = vunpack.c.h.b16 %v95
    %v550 = vunpack.c.l.b16 %v96
    %v551 = vunpack.c.h.b16 %v96
    %v552 = vunpack.c.l.b16 %v97
    %v553 = vunpack.c.h.b16 %v97
    %v554 = vunpack.c.l.b16 %v98
    %v555 = vunpack.c.h.b16 %v98
    %v556 = vunpack.c.l.b16 %v99
    %v557 = vunpack.c.h.b16 %v99
    %v558 = vunpack.c.l.b16 %v100
    %v559 = vunpack.c.h.b16 %v100
    %v560 = vunpack.c.l.b16 %v101
    %v561 = vunpack.c.h.b16 %v101
    %v562 = vunpack.c.l.b16 %v102
    %v563 = vunpack.c.h.b16 %v102
    %v564 = vunpack.c.l.b16 %v103
    %v565 = vunpack.c.h.b16 %v103
    %v566 = vunpack.c.l.b16 %v104
    %v567 = vunpack.c.h.b16 %v104
    %v568 = vunpack.c.l.b16 %v105
    %v569 = vunpack.c.h.b16 %v105
    %v570 = vunpack.c.l.b16 %v106
    %v571 = vunpack.c.h.b16 %v106
    %v572 = vunpack.c.l.b16 %v107
    %v573 = vunpack.c.h.b16 %v107
    %v574 = vunpack.c.l.b16 %v108
    %v575 = vunpack.c.h.b16 %v108
    %v576 = vunpack.c.l.b16 %v109
    %v577 = vunpack.c.h.b16 %v109
    %v578 = vunpack.c.l.b16 %v110
    %v579 = vunpack.c.h.b16 %v110
    %v580 = vunpack.c.l.b16 %v111
    %v581 = vunpack.c.h.b16 %v111
    %v582 = vunpack.c.l.b16 %v112
    %v583 = vunpack.c.h.b16 %v112
    %v584 = vunpack.c.l.b16 %v113
    %v585 = vunpack.c.h.b16 %v113
    %v586 = vunpack.c.l.b16 %v114
    %v587 = vunpack.c.h.b16 %v114
    %v588 = vunpack.c.l.b16 %v115
    %v589 = vunpack.c.h.b16 %v115
    %v590 = vunpack.c.l.b16 %v116
    %v591 = vunpack.c.h.b16 %v116
    %v592 = vunpack.c.l.b16 %v117
    %v593 = vunpack.c.h.b16 %v117
    %v594 = vunpack.c.l.b16 %v118
    %v595 = vunpack.c.h.b16 %v118
    %v596 = vunpack.c.l.b16 %v119
    %v597 = vunpack.c.h.b16 %v119
    %v598 = vunpack.c.l.b16 %v120
    %v599 = vunpack.c.h.b16 %v120
    %v600 = vunpack.c.l.b16 %v121
    %v601 = vunpack.c.h.b16 %v121
    %v602 = vunpack.c.l.b16 %v122
    %v603 = vunpack.c.h.b16 %v122
    %v604 = vunpack.c.l.b16 %v123
    %v605 = vunpack.c.h.b16 %v123
    %v606 = vunpack.c.l.b16 %v124
    %v607 = vunpack.c.h.b16 %v124
    %v608 = vunpack.c.l.b16 %v125
    %v609 = vunpack.c.h.b16 %v125
    %v610 = vunpack.c.l.b16 %v126
    %v611 = vunpack.c.h.b16 %v126
    %v612 = vunpack.c.l.b16 %v127
    %v613 = vunpack.c.h.b16 %v127
    %v614 = vunpack.c.l.b16 %v128
    %v615 = vunpack.c.h.b16 %v128
    %v616 = vunpack.c.l.b16 %v129
    %v617 = vunpack.c.h.b16 %v129
    %v618 = vunpack.c.l.b16 %v130
    %v619 = vunpack.c.h.b16 %v130
    %v620 = vunpack.c.l.b16 %v131
    %v621 = vunpack.c.h.b16 %v131
    %v622 = vunpack.c.l.b16 %v132
    %v623 = vunpack.c.h.b16 %v132
    %v624 = vunpack.c.l.b16 %v133
    %v625 = vunpack.c.h.b16 %v133
    %v626 = vunpack.c.l.b16 %v134
    %v627 = vunpack.c.h.b16 %v134
    %v628 = vunpack.c.l.b16 %v135
    %v629 = vunpack.c.h.b16 %v135
    %v630 = vunpack.c.l.b16 %v136
    %v631 = vunpack.c.h.b16 %v136
    %v632 = vunpack.c.l.b16 %v137
    %v633 = vunpack.c.h.b16 %v137
    %v634 = vunpack.c.l.b16 %v138
    %v635 = vunpack.c.h.b16 %v138
    %v636 = vunpack.c.l.b16 %v139
    %v637 = vunpack.c.h.b16 %v139
    %v638 = vunpack.c.l.b16 %v140
    %v639 = vunpack.c.h.b16 %v140
    %v640 = vunpack.c.l.b16 %v141
    %v641 = vunpack.c.h.b16 %v141
    %v642 = vunpack.c.l.b16 %v142
    %v643 = vunpack.c.h.b16 %v142
    %v644 = vunpack.c.l.b16 %v143
    %v645 = vunpack.c.h.b16 %v143
    %v646 = vunpack.c.l.b16 %v144
    %v647 = vunpack.c.h.b16 %v144
    %v648 = vunpack.c.l.b16 %v145
    %v649 = vunpack.c.h.b16 %v145
    %v650 = vunpack.c.l.b16 %v146
    %v651 = vunpack.c.h.b16 %v146
    %v652 = vunpack.c.l.b16 %v147
    %v653 = vunpack.c.h.b16 %v147
    %v654 = vunpack.c.l.b16 %v148
    %v655 = vunpack.c.h.b16 %v148
    %v656 = vunpack.c.l.b16 %v149
    %v657 = vunpack.c.h.b16 %v149
    %v658 = vunpack.c.l.b16 %v150
    %v659 = vunpack.c.h.b16 %v150
    %v660 = vunpack.c.l.b16 %v151
    %v661 = vunpack.c.h.b16 %v151
    %v662 = vunpack.c.l.b16 %v152
    %v663 = vunpack.c.h.b16 %v152
    %v664 = vunpack.c.l.b16 %v153
    %v665 = vunpack.c.h.b16 %v153
    %v666 = vunpack.c.l.b16 %v154
    %v667 = vunpack.c.h.b16 %v154
    %v668 = vunpack.c.l.b16 %v155
    %v669 = vunpack.c.h.b16 %v155
    %v670 = vunpack.c.l.b16 %v156
    %v671 = vunpack.c.h.b16 %v156
    %v672 = vunpack.c.l.b16 %v157
    %v673 = vunpack.c.h.b16 %v157
    %v674 = vunpack.c.l.b16 %v158
    %v675 = vunpack.c.h.b16 %v158
    %v676 = vunpack.c.l.b16 %v159
    %v677 = vunpack.c.h.b16 %v159
    %v678 = vunpack.c.l.b16 %v160
    %v679 = vunpack.c.h.b16 %v160
    %v680 = vunpack.c.l.b16 %v161
    %v681 = vunpack.c.h.b16 %v161
    %v682 = vunpack.c.l.b16 %v162
    %v683 = vunpack.c.h.b16 %v162
    %v684 = vunpack.c.l.b16 %v163
    %v685 = vunpack.c.h.b16 %v163
    %v686 = vunpack.c.l.b16 %v164
    %v687 = vunpack.c.h.b16 %v164
    %v688 = vunpack.c.l.b16 %v165
    %v689 = vunpack.c.h.b16 %v165
    %v690 = vunpack.c.l.b16 %v166
    %v691 = vunpack.c.h.b16 %v166
    %v692 = vunpack.c.l.b16 %v167
    %v693 = vunpack.c.h.b16 %v167
    %v694 = vunpack.c.l.b16 %v168
    %v695 = vunpack.c.h.b16 %v168
    %v696 = vunpack.c.l.b16 %v169
    %v697 = vunpack.c.h.b16 %v169
    %v698 = vunpack.c.l.b16 %v170
    %v699 = vunpack.c.h.b16 %v170
    %v700 = vunpack.c.l.b16 %v171
    %v701 = vunpack.c.h.b16 %v171
    %v702 = vunpack.c.l.b16 %v172
    %v703 = vunpack.c.h.b16 %v172
    %v704 = vunpack.c.l.b16 %v173
    %v705 = vunpack.c.h.b16 %v173
    %v706 = vunpack.c.l.b16 %v174
    %v707 = vunpack.c.h.b16 %v174
    %v708 = vunpack.c.l.b16 %v175
    %v709 = vunpack.c.h.b16 %v175
    %v710 = vunpack.c.l.b16 %v176
    %v711 = vunpack.c.h.b16 %v176
    %v712 = vunpack.c.l.b16 %v177
    %v713 = vunpack.c.h.b16 %v177
    %v714 = vunpack.c.l.b16 %v178
    %v715 = vunpack.c.h.b16 %v178
    %v716 = vunpack.c.l.b16 %v179
    %v717 = vunpack.c.h.b16 %v179
    %v718 = vunpack.c.l.b16 %v180
    %v719 = vunpack.c.h.b16 %v180
    %v720 = vunpack.c.l.b16 %v181
    %v721 = vunpack.c.h.b16 %v181
    %v722 = vunpack.c.l.b16 %v182
    %v723 = vunpack.c.h.b16 %v182
    %v724 = vunpack.c.l.b16 %v183
    %v725 = vunpack.c.h.b16 %v183
    %v726 = vunpack.c.l.b16 %v184
    %v727 = vunpack.c.h.b16 %v184
    %v728 = vunpack.c.l.b16 %v185
    %v729 = vunpack.c.h.b16 %v185
    %v730 = vunpack.c.l.b16 %v186
    %v731 = vunpack.c.h.b16 %v186
    %v732 = vunpack.c.l.b16 %v187
    %v733 = vunpack.c.h.b16 %v187
    %v734 = vunpack.c.l.b16 %v188
    %v735 = vunpack.c.h.b16 %v188
    %v736 = vunpack.c.l.b16 %v189
    %v737 = vunpack.c.h.b16 %v189
    %v738 = vunpack.c.l.b16 %v190
    %v739 = vunpack.c.h.b16 %v190
    %v740 = vunpack.c.l.b16 %v191
    %v741 = vunpack.c.h.b16 %v191
    %v742 = vunpack.c.l.b16 %v192
    %v743 = vunpack.c.h.b16 %v192
    %v744 = vunpack.c.l.b16 %v193
    %v745 = vunpack.c.h.b16 %v193
    %v746 = vunpack.c.l.b16 %v194
    %v747 = vunpack.c.h.b16 %v194
    %v748 = vunpack.c.l.b16 %v195
    %v749 = vunpack.c.h.b16 %v195
    %v750 = vunpack.c.l.b16 %v196
    %v751 = vunpack.c.h.b16 %v196
    %v752 = vunpack.c.l.b16 %v197
    %v753 = vunpack.c.h.b16 %v197
    %v754 = vunpack.c.l.b16 %v198
    %v755 = vunpack.c.h.b16 %v198
    %v756 = vunpack.c.l.b16 %v199
    %v757 = vunpack.c.h.b16 %v199
    %v758 = vunpack.c.l.b16 %v200
    %v759 = vunpack.c.h.b16 %v200
    %v760 = vunpack.c.l.b16 %v201
    %v761 = vunpack.c.h.b16 %v201
    %v762 = vunpack.c.l.b16 %v202
    %v763 = vunpack.c.h.b16 %v202
    %v764 = vunpack.c.l.b16 %v203
    %v765 = vunpack.c.h.b16 %v203
    %v766 = vunpack.c.l.b16 %v204
    %v767 = vunpack.c.h.b16 %v204
    %v768 = vunpack.c.l.b16 %v205
    %v769 = vunpack.c.h.b16 %v205
    %v770 = vunpack.c.l.b16 %v206
    %v771 = vunpack.c.h.b16 %v206
    %v772 = vunpack.c.l.b16 %v207
    %v773 = vunpack.c.h.b16 %v207
    %v774 = vunpack.c.l.b16 %v208
    %v775 = vunpack.c.h.b16 %v208
    %v776 = vunpack.c.l.b16 %v209
    %v777 = vunpack.c.h.b16 %v209
    %v778 = vunpack.c.l.b16 %v210
    %v779 = vunpack.c.h.b16 %v210
    %v780 = vunpack.c.l.b16 %v211
    %v781 = vunpack.c.h.b16 %v211
    %v782 = vunpack.c.l.b16 %v212
    %v783 = vunpack.c.h.b16 %v212
    %v784 = vunpack.c.l.b16 %v213
    %v785 = vunpack.c.h.b16 %v213
    %v786 = vunpack.c.l.b16 %v214
    %v787 = vunpack.c.h.b16 %v214
    %v788 = vunpack.c.l.b16 %v215
    %v789 = vunpack.c.h.b16 %v215
    %v790 = vunpack.c.l.b16 %v216
    %v791 = vunpack.c.h.b16 %v216
    %v792 = vunpack.c.l.b16 %v217
    %v793 = vunpack.c.h.b16 %v217
    %v794 = vunpack.c.l.b16 %v218
    %v795 = vunpack.c.h.b16 %v218
    %v796 = vunpack.c.l.b16 %v219
    %v797 = vunpack.c.h.b16 %v219
    %v798 = vunpack.c.l.b16 %v220
    %v799 = vunpack.c.h.b16 %v220
    %v800 = vunpack.c.l.b16 %v221
    %v801 = vunpack.c.h.b16 %v221
    %v802 = vunpack.c.l.b16 %v222
    %v803 = vunpack.c.h.b16 %v222
    %v804 = vunpack.c.l.b16 %v223
    %v805 = vunpack.c.h.b16 %v223
    %v806 = vunpack.c.l.b16 %v224
    %v807 = vunpack.c.h.b16 %v224
    %v808 = vunpack.c.l.b16 %v225
    %v809 = vunpack.c.h.b16 %v225
    %v810 = vunpack.c.l.b16 %v226
    %v811 = vunpack.c.h.b16 %v226
    %v812 = vunpack.c.l.b16 %v227
    %v813 = vunpack.c.h.b16 %v227
    %v814 = vunpack.c.l.b16 %v228
    %v815 = vunpack.c.h.b16 %v228
    %v816 = vunpack.c.l.b16 %v229
    %v817 = vunpack.c.h.b16 %v229
    %v818 = vunpack.c.l.b16 %v230
    %v819 = vunpack.c.h.b16 %v230
    %v820 = vunpack.c.l.b16 %v231
    %v821 = vunpack.c.h.b16 %v231
    %v822 = vunpack.c.l.b16 %v232
    %v823 = vunpack.c.h.b16 %v232
    %v824 = vunpack.c.l.b16 %v233
    %v825 = vunpack.c.h.b16 %v233
    %v826 = vunpack.c.l.b16 %v234
    %v827 = vunpack.c.h.b16 %v234
    %v828 = vunpack.c.l.b16 %v235
    %v829 = vunpack.c.h.b16 %v235
    %v830 = vunpack.c.l.b16 %v236
    %v831 = vunpack.c.h.b16 %v236
    %v832 = vunpack.c.l.b16 %v237
    %v833 = vunpack.c.h.b16 %v237
    %v834 = vunpack.c.l.b16 %v238
    %v835 = vunpack.c.h.b16 %v238
    %v836 = vunpack.c.l.b16 %v239
    %v837 = vunpack.c.h.b16 %v239
    %v838 = vunpack.c.l.b16 %v240
    %v839 = vunpack.c.h.b16 %v240
    %v840 = vunpack.c.l.b16 %v241
    %v841 = vunpack.c.h.b16 %v241
    %v842 = vunpack.c.l.b16 %v242
    %v843 = vunpack.c.h.b16 %v242
    %v844 = vunpack.c.l.b16 %v243
    %v845 = vunpack.c.h.b16 %v243
    %v846 = vunpack.c.l.b16 %v244
    %v847 = vunpack.c.h.b16 %v244
    %v848 = vunpack.c.l.b16 %v245
    %v849 = vunpack.c.h.b16 %v245
    %v850 = vunpack.c.l.b16 %v246
    %v851 = vunpack.c.h.b16 %v246
    %v852 = vunpack.c.l.b16 %v247
    %v853 = vunpack.c.h.b16 %v247
    %v854 = vunpack.c.l.b16 %v248
    %v855 = vunpack.c.h.b16 %v248
    %v856 = vunpack.c.l.b16 %v249
    %v857 = vunpack.c.h.b16 %v249
    %v858 = vunpack.c.l.b16 %v250
    %v859 = vunpack.c.h.b16 %v250
    %v860 = vunpack.c.l.b16 %v251
    %v861 = vunpack.c.h.b16 %v251
    %v862 = vpack.c.b16 %v474, %v470
    %v863 = vpack.c.b16 %v475, %v471
    %v864 = vpack.c.b16 %v476, %v472
    %v865 = vpack.c.b16 %v477, %v473
    %v866 = vpack.c.b16 %v482, %v478
    %v867 = vpack.c.b16 %v483, %v479
    %v868 = vpack.c.b16 %v484, %v480
    %v869 = vpack.c.b16 %v485, %v481
    %v870 = vpack.c.b16 %v490, %v486
    %v871 = vpack.c.b16 %v491, %v487
    %v872 = vpack.c.b16 %v492, %v488
    %v873 = vpack.c.b16 %v493, %v489
    %v874 = vpack.c.b16 %v498, %v494
    %v875 = vpack.c.b16 %v499, %v495
    %v876 = vpack.c.b16 %v500, %v496
    %v877 = vpack.c.b16 %v501, %v497
    %v878 = vpack.c.b16 %v506, %v502
    %v879 = vpack.c.b16 %v507, %v503
    %v880 = vpack.c.b16 %v508, %v504
    %v881 = vpack.c.b16 %v509, %v505
    %v882 = vpack.c.b16 %v514, %v510
    %v883 = vpack.c.b16 %v515, %v511
    %v884 = vpack.c.b16 %v516, %v512
    %v885 = vpack.c.b16 %v517, %v513
    %v886 = vpack.c.b16 %v522, %v518
    %v887 = vpack.c.b16 %v523, %v519
    %v888 = vpack.c.b16 %v524, %v520
    %v889 = vpack.c.b16 %v525, %v521
    %v890 = vpack.c.b16 %v530, %v526
    %v891 = vpack.c.b16 %v531, %v527
    %v892 = vpack.c.b16 %v532, %v528
    %v893 = vpack.c.b16 %v533, %v529
    %v894 = vpack.c.b16 %v538, %v534
    %v895 = vpack.c.b16 %v539, %v535
    %v896 = vpack.c.b16 %v540, %v536
    %v897 = vpack.c.b16 %v541, %v537
    %v898 = vpack.c.b16 %v546, %v542
    %v899 = vpack.c.b16 %v547, %v543
    %v900 = vpack.c.b16 %v548, %v544
    %v901 = vpack.c.b16 %v549, %v545
    %v902 = vpack.c.b16 %v554, %v550
    %v903 = vpack.c.b16 %v555, %v551
    %v904 = vpack.c.b16 %v556, %v552
    %v905 = vpack.c.b16 %v557, %v553
    %v906 = vpack.c.b16 %v562, %v558
    %v907 = vpack.c.b16 %v563, %v559
    %v908 = vpack.c.b16 %v564, %v560
    %v909 = vpack.c.b16 %v565, %v561
    %v910 = vpack.c.b16 %v570, %v566
    %v911 = vpack.c.b16 %v571, %v567
    %v912 = vpack.c.b16 %v572, %v568
    %v913 = vpack.c.b16 %v573, %v569
    %v914 = vpack.c.b16 %v578, %v574
    %v915 = vpack.c.b16 %v579, %v575
    %v916 = vpack.c.b16 %v580, %v576
    %v917 = vpack.c.b16 %v581, %v577
    %v918 = vpack.c.b16 %v586, %v582
    %v919 = vpack.c.b16 %v587, %v583
    %v920 = vpack.c.b16 %v588, %v584
    %v921 = vpack.c.b16 %v589, %v585
    %v922 = vpack.c.b16 %v594, %v590
    %v923 = vpack.c.b16 %v595, %v591
    %v924 = vpack.c.b16 %v596, %v592
    %v925 = vpack.c.b16 %v597, %v593
    %v926 = vpack.c.b16 %v602, %v598
    %v927 = vpack.c.b16 %v603, %v599
    %v928 = vpack.c.b16 %v604, %v600
    %v929 = vpack.c.b16 %v605, %v601
    %v930 = vpack.c.b16 %v610, %v606
    %v931 = vpack.c.b16 %v611, %v607
    %v932 = vpack.c.b16 %v612, %v608
    %v933 = vpack.c.b16 %v613, %v609
    %v934 = vpack.c.b16 %v618, %v614
    %v935 = vpack.c.b16 %v619, %v615
    %v936 = vpack.c.b16 %v620, %v616
    %v937 = vpack.c.b16 %v621, %v617
    %v938 = vpack.c.b16 %v626, %v622
    %v939 = vpack.c.b16 %v627, %v623
    %v940 = vpack.c.b16 %v628, %v624
    %v941 = vpack.c.b16 %v629, %v625
    %v942 = vpack.c.b16 %v634, %v630
    %v943 = vpack.c.b16 %v635, %v631
    %v944 = vpack.c.b16 %v636, %v632
    %v945 = vpack.c.b16 %v637, %v633
    %v946 = vpack.c.b16 %v642, %v638
    %v947 = vpack.c.b16 %v643, %v639
    %v948 = vpack.c.b16 %v644, %v640
    %v949 = vpack.c.b16 %v645, %v641
    %v950 = vpack.c.b16 %v650, %v646
    %v951 = vpack.c.b16 %v651, %v647
    %v952 = vpack.c.b16 %v652, %v648
    %v953 = vpack.c.b16 %v653, %v649
    %v954 = vpack.c.b16 %v658, %v654
    %v955 = vpack.c.b16 %v659, %v655
    %v956 = vpack.c.b16 %v660, %v656
    %v957 = vpack.c.b16 %v661, %v657
    %v958 = vpack.c.b16 %v666, %v662
    %v959 = vpack.c.b16 %v667, %v663
    %v960 = vpack.c.b16 %v668, %v664
    %v961 = vpack.c.b16 %v669, %v665
    %v962 = vpack.c.b16 %v674, %v670
    %v963 = vpack.c.b16 %v675, %v671
    %v964 = vpack.c.b16 %v676, %v672
    %v965 = vpack.c.b16 %v677, %v673
    %v966 = vpack.c.b16 %v682, %v678
    %v967 = vpack.c.b16 %v683, %v679
    %v968 = vpack.c.b16 %v684, %v680
    %v969 = vpack.c.b16 %v685, %v681
    %v970 = vpack.c.b16 %v690, %v686
    %v971 = vpack.c.b16 %v691, %v687
    %v972 = vpack.c.b16 %v692, %v688
    %v973 = vpack.c.b16 %v693, %v689
    %v974 = vpack.c.b16 %v698, %v694
    %v975 = vpack.c.b16 %v699, %v695
    %v976 = vpack.c.b16 %v700, %v696
    %v977 = vpack.c.b16 %v701, %v697
    %v978 = vpack.c.b16 %v706, %v702
    %v979 = vpack.c.b16 %v707, %v703
    %v980 = vpack.c.b16 %v708, %v704
    %v981 = vpack.c.b16 %v709, %v705
    %v982 = vpack.c.b16 %v714, %v710
    %v983 = vpack.c.b16 %v715, %v711
    %v984 = vpack.c.b16 %v716, %v712
    %v985 = vpack.c.b16 %v717, %v713
    %v986 = vpack.c.b16 %v722, %v718
    %v987 = vpack.c.b16 %v723, %v719
    %v988 = vpack.c.b16 %v724, %v720
    %v989 = vpack.c.b16 %v725, %v721
    %v990 = vpack.c.b16 %v730, %v726
    %v991 = vpack.c.b16 %v731, %v727
    %v992 = vpack.c.b16 %v732, %v728
    %v993 = vpack.c.b16 %v733, %v729
    %v994 = vpack.c.b16 %v738, %v734
    %v995 = vpack.c.b16 %v739, %v735
    %v996 = vpack.c.b16 %v740, %v736
    %v997 = vpack.c.b16 %v741, %v737
    %v998 = vpack.c.b16 %v746, %v742
    %v999 = vpack.c.b16 %v747, %v743
    %v1000 = vpack.c.b16 %v748, %v744
    %v1001 = vpack.c.b16 %v749, %v745
    %v1002 = vpack.c.b16 %v754, %v750
    %v1003 = vpack.c.b16 %v755, %v751
    %v1004 = vpack.c.b16 %v756, %v752
    %v1005 = vpack.c.b16 %v757, %v753
    %v1006 = vpack.c.b16 %v762, %v758
    %v1007 = vpack.c.b16 %v763, %v759
    %v1008 = vpack.c.b16 %v764, %v760
    %v1009 = vpack.c.b16 %v765, %v761
    %v1010 = vpack.c.b16 %v770, %v766
    %v1011 = vpack.c.b16 %v771, %v767
    %v1012 = vpack.c.b16 %v772, %v768
    %v1013 = vpack.c.b16 %v773, %v769
    %v1014 = vpack.c.b16 %v778, %v774
    %v1015 = vpack.c.b16 %v779, %v775
    %v1016 = vpack.c.b16 %v780, %v776
    %v1017 = vpack.c.b16 %v781, %v777
    %v1018 = vpack.c.b16 %v786, %v782
    %v1019 = vpack.c.b16 %v787, %v783
    %v1020 = vpack.c.b16 %v788, %v784
    %v1021 = vpack.c.b16 %v789, %v785
    %v1022 = vpack.c.b16 %v794, %v790
    %v1023 = vpack.c.b16 %v795, %v791
    %v1024 = vpack.c.b16 %v796, %v792
    %v1025 = vpack.c.b16 %v797, %v793
    %v1026 = vpack.c.b16 %v802, %v798
    %v1027 = vpack.c.b16 %v803, %v799
    %v1028 = vpack.c.b16 %v804, %v800
    %v1029 = vpack.c.b16 %v805, %v801
    %v1030 = vpack.c.b16 %v810, %v806
    %v1031 = vpack.c.b16 %v811, %v807
    %v1032 = vpack.c.b16 %v812, %v808
    %v1033 = vpack.c.b16 %v813, %v809
    %v1034 = vpack.c.b16 %v818, %v814
    %v1035 = vpack.c.b16 %v819, %v815
    %v1036 = vpack.c.b16 %v820, %v816
    %v1037 = vpack.c.b16 %v821, %v817
    %v1038 = vpack.c.b16 %v826, %v822
    %v1039 = vpack.c.b16 %v827, %v823
    %v1040 = vpack.c.b16 %v828, %v824
    %v1041 = vpack.c.b16 %v829, %v825
    %v1042 = vpack.c.b16 %v834, %v830
    %v1043 = vpack.c.b16 %v835, %v831
    %v1044 = vpack.c.b16 %v836, %v832
    %v1045 = vpack.c.b16 %v837, %v833
    %v1046 = vpack.c.b16 %v842, %v838
    %v1047 = vpack.c.b16 %v843, %v839
    %v1048 = vpack.c.b16 %v844, %v840
    %v1049 = vpack.c.b16 %v845, %v841
    %v1050 = vpack.c.b16 %v850, %v846
    %v1051 = vpack.c.b16 %v851, %v847
    %v1052 = vpack.c.b16 %v852, %v848
    %v1053 = vpack.c.b16 %v853, %v849
    %v1054 = vpack.c.b16 %v858, %v854
    %v1055 = vpack.c.b16 %v859, %v855
    %v1056 = vpack.c.b16 %v860, %v856
    %v1057 = vpack.c.b16 %v861, %v857
    %vm1254 = vcmask 130048
    %v1256 = vsel %vm1254, %v55, 0
    %1258 = vmatprep.subr.bf16.mxu0 %v891
    %1259 = vmatpush1.bf16.msra.mxu0 %v890
    %1260 = vmatprep.subr.bf16.mxu0 %v887
    %1261 = vmatpush1.bf16.msra.mxu0 %v886
    %1262 = vmatprep.subr.bf16.mxu0 %v883
    %1263 = vmatpush1.bf16.msra.mxu0 %v882
    %1264 = vmatprep.subr.bf16.mxu0 %v879
    %1265 = vmatpush1.bf16.msra.mxu0 %v878
    %1266 = vmatprep.subr.bf16.mxu0 %v875
    %1267 = vmatpush1.bf16.msra.mxu0 %v874
    %1268 = vmatprep.subr.bf16.mxu0 %v871
    %1269 = vmatpush1.bf16.msra.mxu0 %v870
    %1270 = vmatprep.subr.bf16.mxu0 %v867
    %1271 = vmatpush1.bf16.msra.mxu0 %v866
    %1272 = vmatprep.subr.bf16.mxu0 %v863
    %1273 = vmatpush1.bf16.msra.mxu0 %v862
    %1274 = vmatprep.subr.bf16.mxu0 %v923
    %1275 = vmatpush2.bf16.msra.mxu0 %v922
    %1276 = vmatprep.subr.bf16.mxu0 %v919
    %1277 = vmatpush2.bf16.msra.mxu0 %v918
    %1278 = vmatprep.subr.bf16.mxu0 %v915
    %1279 = vmatpush2.bf16.msra.mxu0 %v914
    %1280 = vmatprep.subr.bf16.mxu0 %v911
    %1281 = vmatpush2.bf16.msra.mxu0 %v910
    %1282 = vmatprep.subr.bf16.mxu0 %v907
    %1283 = vmatpush2.bf16.msra.mxu0 %v906
    %1284 = vmatprep.subr.bf16.mxu0 %v903
    %1285 = vmatpush2.bf16.msra.mxu0 %v902
    %1286 = vmatprep.subr.bf16.mxu0 %v899
    %1287 = vmatpush2.bf16.msra.mxu0 %v898
    %1288 = vmatprep.subr.bf16.mxu0 %v895
    %1289 = vmatpush2.bf16.msra.mxu0 %v894
    %1290 = vmatprep.mubr.bf16.mxu0 %v50
    %1291 = vmatmul.mubr.bf16.gmra.mxu0 %v49
    %v1292 = vpop.f32.mrf.mxu0
    %v1293 = vadd.f32 %v257, %v1292
    %v1294 = vpop.f32.mrf.mxu0
    %v1295 = vadd.f32 %v261, %v1294
    %v1296 = vpop.f32.mrf.mxu0
    %v1297 = vpop.f32.mrf.mxu0
    %1298 = vdwg.mxu0
    %1299 = vmatprep.subr.bf16.mxu0 %v955
    %1300 = vmatpush1.bf16.msra.mxu0 %v954
    %1301 = vmatprep.subr.bf16.mxu0 %v951
    %1302 = vmatpush1.bf16.msra.mxu0 %v950
    %1303 = vmatprep.subr.bf16.mxu0 %v947
    %1304 = vmatpush1.bf16.msra.mxu0 %v946
    %1305 = vmatprep.subr.bf16.mxu0 %v943
    %1306 = vmatpush1.bf16.msra.mxu0 %v942
    %1307 = vmatprep.subr.bf16.mxu0 %v939
    %1308 = vmatpush1.bf16.msra.mxu0 %v938
    %1309 = vmatprep.subr.bf16.mxu0 %v935
    %1310 = vmatpush1.bf16.msra.mxu0 %v934
    %1311 = vmatprep.subr.bf16.mxu0 %v931
    %1312 = vmatpush1.bf16.msra.mxu0 %v930
    %1313 = vmatprep.subr.bf16.mxu0 %v927
    %1314 = vmatpush1.bf16.msra.mxu0 %v926
    %1315 = vmatprep.subr.bf16.mxu0 %v987
    %1316 = vmatpush2.bf16.msra.mxu0 %v986
    %1317 = vmatprep.subr.bf16.mxu0 %v983
    %1318 = vmatpush2.bf16.msra.mxu0 %v982
    %1319 = vmatprep.subr.bf16.mxu0 %v979
    %1320 = vmatpush2.bf16.msra.mxu0 %v978
    %1321 = vmatprep.subr.bf16.mxu0 %v975
    %1322 = vmatpush2.bf16.msra.mxu0 %v974
    %1323 = vmatprep.subr.bf16.mxu0 %v971
    %1324 = vmatpush2.bf16.msra.mxu0 %v970
    %1325 = vmatprep.subr.bf16.mxu0 %v967
    %1326 = vmatpush2.bf16.msra.mxu0 %v966
    %1327 = vmatprep.subr.bf16.mxu0 %v963
    %1328 = vmatpush2.bf16.msra.mxu0 %v962
    %1329 = vmatprep.subr.bf16.mxu0 %v959
    %1330 = vmatpush2.bf16.msra.mxu0 %v958
    %1331 = vmatprep.mubr.bf16.mxu0 %v52
    %1332 = vmatmul.mubr.bf16.gmra.mxu0 %v51
    %v1333 = vpop.f32.mrf.mxu0
    %v1334 = vadd.f32 %v1293, %v1333
    %v1335 = vpop.f32.mrf.mxu0
    %v1336 = vadd.f32 %v1295, %v1335
    %v1337 = vpop.f32.mrf.mxu0
    %v1338 = vpop.f32.mrf.mxu0
    %1339 = vdwg.mxu0
    %1340 = vmatprep.subr.bf16.mxu0 %v1019
    %1341 = vmatpush1.bf16.msra.mxu0 %v1018
    %1342 = vmatprep.subr.bf16.mxu0 %v1015
    %1343 = vmatpush1.bf16.msra.mxu0 %v1014
    %1344 = vmatprep.subr.bf16.mxu0 %v1011
    %1345 = vmatpush1.bf16.msra.mxu0 %v1010
    %1346 = vmatprep.subr.bf16.mxu0 %v1007
    %1347 = vmatpush1.bf16.msra.mxu0 %v1006
    %1348 = vmatprep.subr.bf16.mxu0 %v1003
    %1349 = vmatpush1.bf16.msra.mxu0 %v1002
    %1350 = vmatprep.subr.bf16.mxu0 %v999
    %1351 = vmatpush1.bf16.msra.mxu0 %v998
    %1352 = vmatprep.subr.bf16.mxu0 %v995
    %1353 = vmatpush1.bf16.msra.mxu0 %v994
    %1354 = vmatprep.subr.bf16.mxu0 %v991
    %1355 = vmatpush1.bf16.msra.mxu0 %v990
    %1356 = vmatprep.subr.bf16.mxu0 %v1051
    %1357 = vmatpush2.bf16.msra.mxu0 %v1050
    %1358 = vmatprep.subr.bf16.mxu0 %v1047
    %1359 = vmatpush2.bf16.msra.mxu0 %v1046
    %1360 = vmatprep.subr.bf16.mxu0 %v1043
    %1361 = vmatpush2.bf16.msra.mxu0 %v1042
    %1362 = vmatprep.subr.bf16.mxu0 %v1039
    %1363 = vmatpush2.bf16.msra.mxu0 %v1038
    %1364 = vmatprep.subr.bf16.mxu0 %v1035
    %1365 = vmatpush2.bf16.msra.mxu0 %v1034
    %1366 = vmatprep.subr.bf16.mxu0 %v1031
    %1367 = vmatpush2.bf16.msra.mxu0 %v1030
    %1368 = vmatprep.subr.bf16.mxu0 %v1027
    %1369 = vmatpush2.bf16.msra.mxu0 %v1026
    %1370 = vmatprep.subr.bf16.mxu0 %v1023
    %1371 = vmatpush2.bf16.msra.mxu0 %v1022
    %1372 = vmatprep.mubr.bf16.mxu0 %v54
    %1373 = vmatmul.mubr.bf16.gmra.mxu0 %v53
    %v1374 = vpop.f32.mrf.mxu0
    %v1375 = vadd.f32 %v1334, %v1374
    %v1376 = vpop.f32.mrf.mxu0
    %v1377 = vadd.f32 %v1336, %v1376
    %v1378 = vpop.f32.mrf.mxu0
    %v1379 = vpop.f32.mrf.mxu0
    %1380 = vdwg.mxu0
    %1381 = vmatprep.subr.bf16.mxu0 0
    %1382 = vmatpush1.bf16.msra.mxu0 0
    %1383 = vmatprep.subr.bf16.mxu0 0
    %1384 = vmatpush1.bf16.msra.mxu0 0
    %1385 = vmatprep.subr.bf16.mxu0 0
    %1386 = vmatpush1.bf16.msra.mxu0 0
    %1387 = vmatprep.subr.bf16.mxu0 0
    %1388 = vmatpush1.bf16.msra.mxu0 0
    %1389 = vmatprep.subr.bf16.mxu0 0
    %1390 = vmatpush1.bf16.msra.mxu0 0
    %1391 = vmatprep.subr.bf16.mxu0 0
    %1392 = vmatpush1.bf16.msra.mxu0 0
    %1393 = vmatprep.subr.bf16.mxu0 0
    %1394 = vmatpush1.bf16.msra.mxu0 0
    %1395 = vmatprep.subr.bf16.mxu0 %v1055
    %1396 = vmatpush1.bf16.msra.mxu0 %v1054
    %1397 = vmatprep.subr.bf16.mxu0 0
    %1398 = vmatpush2.bf16.msra.mxu0 0
    %1399 = vmatprep.subr.bf16.mxu0 0
    %1400 = vmatpush2.bf16.msra.mxu0 0
    %1401 = vmatprep.subr.bf16.mxu0 0
    %1402 = vmatpush2.bf16.msra.mxu0 0
    %1403 = vmatprep.subr.bf16.mxu0 0
    %1404 = vmatpush2.bf16.msra.mxu0 0
    %1405 = vmatprep.subr.bf16.mxu0 0
    %1406 = vmatpush2.bf16.msra.mxu0 0
    %1407 = vmatprep.subr.bf16.mxu0 0
    %1408 = vmatpush2.bf16.msra.mxu0 0
    %1409 = vmatprep.subr.bf16.mxu0 0
    %1410 = vmatpush2.bf16.msra.mxu0 0
    %1411 = vmatprep.subr.bf16.mxu0 0
    %1412 = vmatpush2.bf16.msra.mxu0 0
    %1413 = vmatprep.mubr.bf16.mxu0 0
    %1414 = vmatmul.mubr.bf16.gmra.mxu0 %v1256
    %v1415 = vpop.f32.mrf.mxu0
    %v1416 = vadd.f32 %v1375, %v1415
    %v1417 = vpop.f32.mrf.mxu0
    %v1418 = vadd.f32 %v1377, %v1417
    %v1419 = vpop.f32.mrf.mxu0
    %v1420 = vpop.f32.mrf.mxu0
    %1421 = vdwg.mxu0
    %1422 = vmatprep.subr.bf16.mxu0 %v893
    %1423 = vmatpush1.bf16.msra.mxu0 %v892
    %1424 = vmatprep.subr.bf16.mxu0 %v889
    %1425 = vmatpush1.bf16.msra.mxu0 %v888
    %1426 = vmatprep.subr.bf16.mxu0 %v885
    %1427 = vmatpush1.bf16.msra.mxu0 %v884
    %1428 = vmatprep.subr.bf16.mxu0 %v881
    %1429 = vmatpush1.bf16.msra.mxu0 %v880
    %1430 = vmatprep.subr.bf16.mxu0 %v877
    %1431 = vmatpush1.bf16.msra.mxu0 %v876
    %1432 = vmatprep.subr.bf16.mxu0 %v873
    %1433 = vmatpush1.bf16.msra.mxu0 %v872
    %1434 = vmatprep.subr.bf16.mxu0 %v869
    %1435 = vmatpush1.bf16.msra.mxu0 %v868
    %1436 = vmatprep.subr.bf16.mxu0 %v865
    %1437 = vmatpush1.bf16.msra.mxu0 %v864
    %1438 = vmatprep.subr.bf16.mxu0 %v925
    %1439 = vmatpush2.bf16.msra.mxu0 %v924
    %1440 = vmatprep.subr.bf16.mxu0 %v921
    %1441 = vmatpush2.bf16.msra.mxu0 %v920
    %1442 = vmatprep.subr.bf16.mxu0 %v917
    %1443 = vmatpush2.bf16.msra.mxu0 %v916
    %1444 = vmatprep.subr.bf16.mxu0 %v913
    %1445 = vmatpush2.bf16.msra.mxu0 %v912
    %1446 = vmatprep.subr.bf16.mxu0 %v909
    %1447 = vmatpush2.bf16.msra.mxu0 %v908
    %1448 = vmatprep.subr.bf16.mxu0 %v905
    %1449 = vmatpush2.bf16.msra.mxu0 %v904
    %1450 = vmatprep.subr.bf16.mxu0 %v901
    %1451 = vmatpush2.bf16.msra.mxu0 %v900
    %1452 = vmatprep.subr.bf16.mxu0 %v897
    %1453 = vmatpush2.bf16.msra.mxu0 %v896
    %1454 = vmatprep.mubr.bf16.mxu0 %v50
    %1455 = vmatmul.mubr.bf16.gmra.mxu0 %v49
    %v1456 = vpop.f32.mrf.mxu0
    %v1457 = vadd.f32 %v265, %v1456
    %v1458 = vpop.f32.mrf.mxu0
    %v1459 = vadd.f32 %v269, %v1458
    %v1460 = vpop.f32.mrf.mxu0
    %v1461 = vpop.f32.mrf.mxu0
    %1462 = vdwg.mxu0
    %1463 = vmatprep.subr.bf16.mxu0 %v957
    %1464 = vmatpush1.bf16.msra.mxu0 %v956
    %1465 = vmatprep.subr.bf16.mxu0 %v953
    %1466 = vmatpush1.bf16.msra.mxu0 %v952
    %1467 = vmatprep.subr.bf16.mxu0 %v949
    %1468 = vmatpush1.bf16.msra.mxu0 %v948
    %1469 = vmatprep.subr.bf16.mxu0 %v945
    %1470 = vmatpush1.bf16.msra.mxu0 %v944
    %1471 = vmatprep.subr.bf16.mxu0 %v941
    %1472 = vmatpush1.bf16.msra.mxu0 %v940
    %1473 = vmatprep.subr.bf16.mxu0 %v937
    %1474 = vmatpush1.bf16.msra.mxu0 %v936
    %1475 = vmatprep.subr.bf16.mxu0 %v933
    %1476 = vmatpush1.bf16.msra.mxu0 %v932
    %1477 = vmatprep.subr.bf16.mxu0 %v929
    %1478 = vmatpush1.bf16.msra.mxu0 %v928
    %1479 = vmatprep.subr.bf16.mxu0 %v989
    %1480 = vmatpush2.bf16.msra.mxu0 %v988
    %1481 = vmatprep.subr.bf16.mxu0 %v985
    %1482 = vmatpush2.bf16.msra.mxu0 %v984
    %1483 = vmatprep.subr.bf16.mxu0 %v981
    %1484 = vmatpush2.bf16.msra.mxu0 %v980
    %1485 = vmatprep.subr.bf16.mxu0 %v977
    %1486 = vmatpush2.bf16.msra.mxu0 %v976
    %1487 = vmatprep.subr.bf16.mxu0 %v973
    %1488 = vmatpush2.bf16.msra.mxu0 %v972
    %1489 = vmatprep.subr.bf16.mxu0 %v969
    %1490 = vmatpush2.bf16.msra.mxu0 %v968
    %1491 = vmatprep.subr.bf16.mxu0 %v965
    %1492 = vmatpush2.bf16.msra.mxu0 %v964
    %1493 = vmatprep.subr.bf16.mxu0 %v961
    %1494 = vmatpush2.bf16.msra.mxu0 %v960
    %1495 = vmatprep.mubr.bf16.mxu0 %v52
    %1496 = vmatmul.mubr.bf16.gmra.mxu0 %v51
    %v1497 = vpop.f32.mrf.mxu0
    %v1498 = vadd.f32 %v1457, %v1497
    %v1499 = vpop.f32.mrf.mxu0
    %v1500 = vadd.f32 %v1459, %v1499
    %v1501 = vpop.f32.mrf.mxu0
    %v1502 = vpop.f32.mrf.mxu0
    %1503 = vdwg.mxu0
    %1504 = vmatprep.subr.bf16.mxu0 %v1021
    %1505 = vmatpush1.bf16.msra.mxu0 %v1020
    %1506 = vmatprep.subr.bf16.mxu0 %v1017
    %1507 = vmatpush1.bf16.msra.mxu0 %v1016
    %1508 = vmatprep.subr.bf16.mxu0 %v1013
    %1509 = vmatpush1.bf16.msra.mxu0 %v1012
    %1510 = vmatprep.subr.bf16.mxu0 %v1009
    %1511 = vmatpush1.bf16.msra.mxu0 %v1008
    %1512 = vmatprep.subr.bf16.mxu0 %v1005
    %1513 = vmatpush1.bf16.msra.mxu0 %v1004
    %1514 = vmatprep.subr.bf16.mxu0 %v1001
    %1515 = vmatpush1.bf16.msra.mxu0 %v1000
    %1516 = vmatprep.subr.bf16.mxu0 %v997
    %1517 = vmatpush1.bf16.msra.mxu0 %v996
    %1518 = vmatprep.subr.bf16.mxu0 %v993
    %1519 = vmatpush1.bf16.msra.mxu0 %v992
    %1520 = vmatprep.subr.bf16.mxu0 %v1053
    %1521 = vmatpush2.bf16.msra.mxu0 %v1052
    %1522 = vmatprep.subr.bf16.mxu0 %v1049
    %1523 = vmatpush2.bf16.msra.mxu0 %v1048
    %1524 = vmatprep.subr.bf16.mxu0 %v1045
    %1525 = vmatpush2.bf16.msra.mxu0 %v1044
    %1526 = vmatprep.subr.bf16.mxu0 %v1041
    %1527 = vmatpush2.bf16.msra.mxu0 %v1040
    %1528 = vmatprep.subr.bf16.mxu0 %v1037
    %1529 = vmatpush2.bf16.msra.mxu0 %v1036
    %1530 = vmatprep.subr.bf16.mxu0 %v1033
    %1531 = vmatpush2.bf16.msra.mxu0 %v1032
    %1532 = vmatprep.subr.bf16.mxu0 %v1029
    %1533 = vmatpush2.bf16.msra.mxu0 %v1028
    %1534 = vmatprep.subr.bf16.mxu0 %v1025
    %1535 = vmatpush2.bf16.msra.mxu0 %v1024
    %1536 = vmatprep.mubr.bf16.mxu0 %v54
    %1537 = vmatmul.mubr.bf16.gmra.mxu0 %v53
    %v1538 = vpop.f32.mrf.mxu0
    %v1539 = vadd.f32 %v1498, %v1538
    %v1540 = vpop.f32.mrf.mxu0
    %v1541 = vadd.f32 %v1500, %v1540
    %v1542 = vpop.f32.mrf.mxu0
    %v1543 = vpop.f32.mrf.mxu0
    %1544 = vdwg.mxu0
    %1545 = vmatprep.subr.bf16.mxu0 0
    %1546 = vmatpush1.bf16.msra.mxu0 0
    %1547 = vmatprep.subr.bf16.mxu0 0
    %1548 = vmatpush1.bf16.msra.mxu0 0
    %1549 = vmatprep.subr.bf16.mxu0 0
    %1550 = vmatpush1.bf16.msra.mxu0 0
    %1551 = vmatprep.subr.bf16.mxu0 0
    %1552 = vmatpush1.bf16.msra.mxu0 0
    %1553 = vmatprep.subr.bf16.mxu0 0
    %1554 = vmatpush1.bf16.msra.mxu0 0
    %1555 = vmatprep.subr.bf16.mxu0 0
    %1556 = vmatpush1.bf16.msra.mxu0 0
    %1557 = vmatprep.subr.bf16.mxu0 0
    %1558 = vmatpush1.bf16.msra.mxu0 0
    %1559 = vmatprep.subr.bf16.mxu0 %v1057
    %1560 = vmatpush1.bf16.msra.mxu0 %v1056
    %1561 = vmatprep.subr.bf16.mxu0 0
    %1562 = vmatpush2.bf16.msra.mxu0 0
    %1563 = vmatprep.subr.bf16.mxu0 0
    %1564 = vmatpush2.bf16.msra.mxu0 0
    %1565 = vmatprep.subr.bf16.mxu0 0
    %1566 = vmatpush2.bf16.msra.mxu0 0
    %1567 = vmatprep.subr.bf16.mxu0 0
    %1568 = vmatpush2.bf16.msra.mxu0 0
    %1569 = vmatprep.subr.bf16.mxu0 0
    %1570 = vmatpush2.bf16.msra.mxu0 0
    %1571 = vmatprep.subr.bf16.mxu0 0
    %1572 = vmatpush2.bf16.msra.mxu0 0
    %1573 = vmatprep.subr.bf16.mxu0 0
    %1574 = vmatpush2.bf16.msra.mxu0 0
    %1575 = vmatprep.subr.bf16.mxu0 0
    %1576 = vmatpush2.bf16.msra.mxu0 0
    %1577 = vmatprep.mubr.bf16.mxu0 0
    %1578 = vmatmul.mubr.bf16.gmra.mxu0 %v1256
    %v1579 = vpop.f32.mrf.mxu0
    %v1580 = vadd.f32 %v1539, %v1579
    %v1581 = vpop.f32.mrf.mxu0
    %v1582 = vadd.f32 %v1541, %v1581
    %v1583 = vpop.f32.mrf.mxu0
    %v1584 = vpop.f32.mrf.mxu0
    %1585 = vdwg.mxu0
    %v1586 = vmax.f32 %v1416, 0.0
    %v1587 = vmax.f32 %v1418, 0.0
    %v1588 = vmax.f32 %v1580, 0.0
    %v1589 = vmax.f32 %v1582, 0.0
    %v1590 = vpack.c.bf16 %v1586, %v1586
    %v1591 = vpack.c.bf16 %v1587, %v1587
    %v1592 = vpack.c.bf16 %v1588, %v1588
    %v1593 = vpack.c.bf16 %v1589, %v1589
    %v1594 = vld [vmem:[%s3] sm:$0xff]
    %v1595 = vld [vmem:[%s3 + $0x8] sm:$0xff]
    %v1596 = vld [vmem:[%s3 + $0x10] sm:$0xff]
    %v1597 = vld [vmem:[%s3 + $0x18] sm:$0xff]
    %v1598 = vld [vmem:[%s3 + $0x20] sm:$0xff]
    %v1599 = vld [vmem:[%s3 + $0x28] sm:$0xff]
    %v1600 = vld [vmem:[%s3 + $0x30] sm:$0xff]
    %v1601 = vld [vmem:[%s3 + $0x38] sm:$0xff]
    %v1602 = vld [vmem:[%s3 + $0x40] sm:$0xff]
    %v1603 = vld [vmem:[%s3 + $0x48] sm:$0xff]
    %v1604 = vld [vmem:[%s3 + $0x50] sm:$0xff]
    %v1605 = vld [vmem:[%s3 + $0x58] sm:$0xff]
    %v1606 = vld [vmem:[%s3 + $0x60] sm:$0xff]
    %v1607 = vld [vmem:[%s3 + $0x68] sm:$0xff]
    %v1608 = vld [vmem:[%s3 + $0x70] sm:$0xff]
    %v1609 = vld [vmem:[%s3 + $0x78] sm:$0xff]
    %v1610 = vld [vmem:[%s3 + $0x80] sm:$0xff]
    %v1611 = vld [vmem:[%s3 + $0x88] sm:$0xff]
    %v1612 = vld [vmem:[%s3 + $0x90] sm:$0xff]
    %v1613 = vld [vmem:[%s3 + $0x98] sm:$0xff]
    %v1614 = vld [vmem:[%s3 + $0xa0] sm:$0xff]
    %v1615 = vld [vmem:[%s3 + $0xa8] sm:$0xff]
    %v1616 = vld [vmem:[%s3 + $0xb0] sm:$0xff]
    %v1617 = vld [vmem:[%s3 + $0xb8] sm:$0xff]
    %v1618 = vld [vmem:[%s3 + $0xc0] sm:$0xff]
    %v1619 = vld [vmem:[%s3 + $0xc8] sm:$0xff]
    %v1620 = vld [vmem:[%s3 + $0xd0] sm:$0xff]
    %v1621 = vld [vmem:[%s3 + $0xd8] sm:$0xff]
    %v1622 = vld [vmem:[%s3 + $0xe0] sm:$0xff]
    %v1623 = vld [vmem:[%s3 + $0xe8] sm:$0xff]
    %v1624 = vld [vmem:[%s3 + $0xf0] sm:$0xff]
    %v1625 = vld [vmem:[%s3 + $0xf8] sm:$0xff]
    %v1626 = vld [vmem:[%s3 + $0x100] sm:$0xff]
    %v1627 = vld [vmem:[%s3 + $0x108] sm:$0xff]
    %v1628 = vld [vmem:[%s3 + $0x110] sm:$0xff]
    %v1629 = vld [vmem:[%s3 + $0x118] sm:$0xff]
    %v1630 = vld [vmem:[%s3 + $0x120] sm:$0xff]
    %v1631 = vld [vmem:[%s3 + $0x128] sm:$0xff]
    %v1632 = vld [vmem:[%s3 + $0x130] sm:$0xff]
    %v1633 = vld [vmem:[%s3 + $0x138] sm:$0xff]
    %v1634 = vld [vmem:[%s3 + $0x140] sm:$0xff]
    %v1635 = vld [vmem:[%s3 + $0x148] sm:$0xff]
    %v1636 = vld [vmem:[%s3 + $0x150] sm:$0xff]
    %v1637 = vld [vmem:[%s3 + $0x158] sm:$0xff]
    %v1638 = vld [vmem:[%s3 + $0x160] sm:$0xff]
    %v1639 = vld [vmem:[%s3 + $0x168] sm:$0xff]
    %v1640 = vld [vmem:[%s3 + $0x170] sm:$0xff]
    %v1641 = vld [vmem:[%s3 + $0x178] sm:$0xff]
    %v1642 = vld [vmem:[%s3 + $0x180] sm:$0xff]
    %v1643 = vld [vmem:[%s3 + $0x188] sm:$0xff]
    %v1644 = vld [vmem:[%s3 + $0x190] sm:$0xff]
    %v1645 = vld [vmem:[%s3 + $0x198] sm:$0xff]
    %v1646 = vld [vmem:[%s3 + $0x1a0] sm:$0xff]
    %v1647 = vld [vmem:[%s3 + $0x1a8] sm:$0xff]
    %v1648 = vld [vmem:[%s3 + $0x1b0] sm:$0xff]
    %v1649 = vld [vmem:[%s3 + $0x1b8] sm:$0xff]
    %v1650 = vld [vmem:[%s3 + $0x1c0] sm:$0xff]
    %v1651 = vld [vmem:[%s3 + $0x1c8] sm:$0xff]
    %v1652 = vld [vmem:[%s3 + $0x1d0] sm:$0xff]
    %v1653 = vld [vmem:[%s3 + $0x1d8] sm:$0xff]
    %v1654 = vld [vmem:[%s3 + $0x1e0] sm:$0xff]
    %v1655 = vld [vmem:[%s3 + $0x1e8] sm:$0xff]
    %v1656 = vld [vmem:[%s3 + $0x1f0] sm:$0xff]
    %v1657 = vld [vmem:[%s3 + $0x1f8] sm:$0xff]
    %v1658 = vld [vmem:[%s4] sm:$0x3]
    %v1660 = vlaneseq
    %v1661 = vshrl.u32 %v1660, 7
    %v1662 = vsub.s32 0, %v1661
    %v1663 = vrot.slane %v1658, %v1662
    %v1664 = vlaneseq
    %v1665 = vshrl.u32 %v1664, 7
    %v1666 = vsub.s32 1, %v1665
    %v1667 = vrot.slane %v1658, %v1666
    %v1734 = vunpack.c.l.b16 %v1594
    %v1735 = vunpack.c.h.b16 %v1594
    %v1736 = vunpack.c.l.b16 %v1595
    %v1737 = vunpack.c.h.b16 %v1595
    %v1738 = vunpack.c.l.b16 %v1596
    %v1739 = vunpack.c.h.b16 %v1596
    %v1740 = vunpack.c.l.b16 %v1597
    %v1741 = vunpack.c.h.b16 %v1597
    %v1742 = vunpack.c.l.b16 %v1598
    %v1743 = vunpack.c.h.b16 %v1598
    %v1744 = vunpack.c.l.b16 %v1599
    %v1745 = vunpack.c.h.b16 %v1599
    %v1746 = vunpack.c.l.b16 %v1600
    %v1747 = vunpack.c.h.b16 %v1600
    %v1748 = vunpack.c.l.b16 %v1601
    %v1749 = vunpack.c.h.b16 %v1601
    %v1750 = vunpack.c.l.b16 %v1602
    %v1751 = vunpack.c.h.b16 %v1602
    %v1752 = vunpack.c.l.b16 %v1603
    %v1753 = vunpack.c.h.b16 %v1603
    %v1754 = vunpack.c.l.b16 %v1604
    %v1755 = vunpack.c.h.b16 %v1604
    %v1756 = vunpack.c.l.b16 %v1605
    %v1757 = vunpack.c.h.b16 %v1605
    %v1758 = vunpack.c.l.b16 %v1606
    %v1759 = vunpack.c.h.b16 %v1606
    %v1760 = vunpack.c.l.b16 %v1607
    %v1761 = vunpack.c.h.b16 %v1607
    %v1762 = vunpack.c.l.b16 %v1608
    %v1763 = vunpack.c.h.b16 %v1608
    %v1764 = vunpack.c.l.b16 %v1609
    %v1765 = vunpack.c.h.b16 %v1609
    %v1766 = vunpack.c.l.b16 %v1610
    %v1767 = vunpack.c.h.b16 %v1610
    %v1768 = vunpack.c.l.b16 %v1611
    %v1769 = vunpack.c.h.b16 %v1611
    %v1770 = vunpack.c.l.b16 %v1612
    %v1771 = vunpack.c.h.b16 %v1612
    %v1772 = vunpack.c.l.b16 %v1613
    %v1773 = vunpack.c.h.b16 %v1613
    %v1774 = vunpack.c.l.b16 %v1614
    %v1775 = vunpack.c.h.b16 %v1614
    %v1776 = vunpack.c.l.b16 %v1615
    %v1777 = vunpack.c.h.b16 %v1615
    %v1778 = vunpack.c.l.b16 %v1616
    %v1779 = vunpack.c.h.b16 %v1616
    %v1780 = vunpack.c.l.b16 %v1617
    %v1781 = vunpack.c.h.b16 %v1617
    %v1782 = vunpack.c.l.b16 %v1618
    %v1783 = vunpack.c.h.b16 %v1618
    %v1784 = vunpack.c.l.b16 %v1619
    %v1785 = vunpack.c.h.b16 %v1619
    %v1786 = vunpack.c.l.b16 %v1620
    %v1787 = vunpack.c.h.b16 %v1620
    %v1788 = vunpack.c.l.b16 %v1621
    %v1789 = vunpack.c.h.b16 %v1621
    %v1790 = vunpack.c.l.b16 %v1622
    %v1791 = vunpack.c.h.b16 %v1622
    %v1792 = vunpack.c.l.b16 %v1623
    %v1793 = vunpack.c.h.b16 %v1623
    %v1794 = vunpack.c.l.b16 %v1624
    %v1795 = vunpack.c.h.b16 %v1624
    %v1796 = vunpack.c.l.b16 %v1625
    %v1797 = vunpack.c.h.b16 %v1625
    %v1798 = vunpack.c.l.b16 %v1626
    %v1799 = vunpack.c.h.b16 %v1626
    %v1800 = vunpack.c.l.b16 %v1627
    %v1801 = vunpack.c.h.b16 %v1627
    %v1802 = vunpack.c.l.b16 %v1628
    %v1803 = vunpack.c.h.b16 %v1628
    %v1804 = vunpack.c.l.b16 %v1629
    %v1805 = vunpack.c.h.b16 %v1629
    %v1806 = vunpack.c.l.b16 %v1630
    %v1807 = vunpack.c.h.b16 %v1630
    %v1808 = vunpack.c.l.b16 %v1631
    %v1809 = vunpack.c.h.b16 %v1631
    %v1810 = vunpack.c.l.b16 %v1632
    %v1811 = vunpack.c.h.b16 %v1632
    %v1812 = vunpack.c.l.b16 %v1633
    %v1813 = vunpack.c.h.b16 %v1633
    %v1814 = vunpack.c.l.b16 %v1634
    %v1815 = vunpack.c.h.b16 %v1634
    %v1816 = vunpack.c.l.b16 %v1635
    %v1817 = vunpack.c.h.b16 %v1635
    %v1818 = vunpack.c.l.b16 %v1636
    %v1819 = vunpack.c.h.b16 %v1636
    %v1820 = vunpack.c.l.b16 %v1637
    %v1821 = vunpack.c.h.b16 %v1637
    %v1822 = vunpack.c.l.b16 %v1638
    %v1823 = vunpack.c.h.b16 %v1638
    %v1824 = vunpack.c.l.b16 %v1639
    %v1825 = vunpack.c.h.b16 %v1639
    %v1826 = vunpack.c.l.b16 %v1640
    %v1827 = vunpack.c.h.b16 %v1640
    %v1828 = vunpack.c.l.b16 %v1641
    %v1829 = vunpack.c.h.b16 %v1641
    %v1830 = vunpack.c.l.b16 %v1642
    %v1831 = vunpack.c.h.b16 %v1642
    %v1832 = vunpack.c.l.b16 %v1643
    %v1833 = vunpack.c.h.b16 %v1643
    %v1834 = vunpack.c.l.b16 %v1644
    %v1835 = vunpack.c.h.b16 %v1644
    %v1836 = vunpack.c.l.b16 %v1645
    %v1837 = vunpack.c.h.b16 %v1645
    %v1838 = vunpack.c.l.b16 %v1646
    %v1839 = vunpack.c.h.b16 %v1646
    %v1840 = vunpack.c.l.b16 %v1647
    %v1841 = vunpack.c.h.b16 %v1647
    %v1842 = vunpack.c.l.b16 %v1648
    %v1843 = vunpack.c.h.b16 %v1648
    %v1844 = vunpack.c.l.b16 %v1649
    %v1845 = vunpack.c.h.b16 %v1649
    %v1846 = vunpack.c.l.b16 %v1650
    %v1847 = vunpack.c.h.b16 %v1650
    %v1848 = vunpack.c.l.b16 %v1651
    %v1849 = vunpack.c.h.b16 %v1651
    %v1850 = vunpack.c.l.b16 %v1652
    %v1851 = vunpack.c.h.b16 %v1652
    %v1852 = vunpack.c.l.b16 %v1653
    %v1853 = vunpack.c.h.b16 %v1653
    %v1854 = vunpack.c.l.b16 %v1654
    %v1855 = vunpack.c.h.b16 %v1654
    %v1856 = vunpack.c.l.b16 %v1655
    %v1857 = vunpack.c.h.b16 %v1655
    %v1858 = vunpack.c.l.b16 %v1656
    %v1859 = vunpack.c.h.b16 %v1656
    %v1860 = vunpack.c.l.b16 %v1657
    %v1861 = vunpack.c.h.b16 %v1657
    %v1862 = vpack.c.b16 %v1736, %v1734
    %v1863 = vpack.c.b16 %v1737, %v1735
    %v1864 = vpack.c.b16 %v1740, %v1738
    %v1865 = vpack.c.b16 %v1741, %v1739
    %v1866 = vpack.c.b16 %v1744, %v1742
    %v1867 = vpack.c.b16 %v1745, %v1743
    %v1868 = vpack.c.b16 %v1748, %v1746
    %v1869 = vpack.c.b16 %v1749, %v1747
    %v1870 = vpack.c.b16 %v1752, %v1750
    %v1871 = vpack.c.b16 %v1753, %v1751
    %v1872 = vpack.c.b16 %v1756, %v1754
    %v1873 = vpack.c.b16 %v1757, %v1755
    %v1874 = vpack.c.b16 %v1760, %v1758
    %v1875 = vpack.c.b16 %v1761, %v1759
    %v1876 = vpack.c.b16 %v1764, %v1762
    %v1877 = vpack.c.b16 %v1765, %v1763
    %v1878 = vpack.c.b16 %v1768, %v1766
    %v1879 = vpack.c.b16 %v1769, %v1767
    %v1880 = vpack.c.b16 %v1772, %v1770
    %v1881 = vpack.c.b16 %v1773, %v1771
    %v1882 = vpack.c.b16 %v1776, %v1774
    %v1883 = vpack.c.b16 %v1777, %v1775
    %v1884 = vpack.c.b16 %v1780, %v1778
    %v1885 = vpack.c.b16 %v1781, %v1779
    %v1886 = vpack.c.b16 %v1784, %v1782
    %v1887 = vpack.c.b16 %v1785, %v1783
    %v1888 = vpack.c.b16 %v1788, %v1786
    %v1889 = vpack.c.b16 %v1789, %v1787
    %v1890 = vpack.c.b16 %v1792, %v1790
    %v1891 = vpack.c.b16 %v1793, %v1791
    %v1892 = vpack.c.b16 %v1796, %v1794
    %v1893 = vpack.c.b16 %v1797, %v1795
    %v1894 = vpack.c.b16 %v1800, %v1798
    %v1895 = vpack.c.b16 %v1801, %v1799
    %v1896 = vpack.c.b16 %v1804, %v1802
    %v1897 = vpack.c.b16 %v1805, %v1803
    %v1898 = vpack.c.b16 %v1808, %v1806
    %v1899 = vpack.c.b16 %v1809, %v1807
    %v1900 = vpack.c.b16 %v1812, %v1810
    %v1901 = vpack.c.b16 %v1813, %v1811
    %v1902 = vpack.c.b16 %v1816, %v1814
    %v1903 = vpack.c.b16 %v1817, %v1815
    %v1904 = vpack.c.b16 %v1820, %v1818
    %v1905 = vpack.c.b16 %v1821, %v1819
    %v1906 = vpack.c.b16 %v1824, %v1822
    %v1907 = vpack.c.b16 %v1825, %v1823
    %v1908 = vpack.c.b16 %v1828, %v1826
    %v1909 = vpack.c.b16 %v1829, %v1827
    %v1910 = vpack.c.b16 %v1832, %v1830
    %v1911 = vpack.c.b16 %v1833, %v1831
    %v1912 = vpack.c.b16 %v1836, %v1834
    %v1913 = vpack.c.b16 %v1837, %v1835
    %v1914 = vpack.c.b16 %v1840, %v1838
    %v1915 = vpack.c.b16 %v1841, %v1839
    %v1916 = vpack.c.b16 %v1844, %v1842
    %v1917 = vpack.c.b16 %v1845, %v1843
    %v1918 = vpack.c.b16 %v1848, %v1846
    %v1919 = vpack.c.b16 %v1849, %v1847
    %v1920 = vpack.c.b16 %v1852, %v1850
    %v1921 = vpack.c.b16 %v1853, %v1851
    %v1922 = vpack.c.b16 %v1856, %v1854
    %v1923 = vpack.c.b16 %v1857, %v1855
    %v1924 = vpack.c.b16 %v1860, %v1858
    %v1925 = vpack.c.b16 %v1861, %v1859
    %1990 = vmatprep.subr.bf16.mxu0 %v1877
    %1991 = vmatpush1.bf16.msra.mxu0 %v1876
    %1992 = vmatprep.subr.bf16.mxu0 %v1875
    %1993 = vmatpush1.bf16.msra.mxu0 %v1874
    %1994 = vmatprep.subr.bf16.mxu0 %v1873
    %1995 = vmatpush1.bf16.msra.mxu0 %v1872
    %1996 = vmatprep.subr.bf16.mxu0 %v1871
    %1997 = vmatpush1.bf16.msra.mxu0 %v1870
    %1998 = vmatprep.subr.bf16.mxu0 %v1869
    %1999 = vmatpush1.bf16.msra.mxu0 %v1868
    %2000 = vmatprep.subr.bf16.mxu0 %v1867
    %2001 = vmatpush1.bf16.msra.mxu0 %v1866
    %2002 = vmatprep.subr.bf16.mxu0 %v1865
    %2003 = vmatpush1.bf16.msra.mxu0 %v1864
    %2004 = vmatprep.subr.bf16.mxu0 %v1863
    %2005 = vmatpush1.bf16.msra.mxu0 %v1862
    %2006 = vmatprep.subr.bf16.mxu0 %v1893
    %2007 = vmatpush2.bf16.msra.mxu0 %v1892
    %2008 = vmatprep.subr.bf16.mxu0 %v1891
    %2009 = vmatpush2.bf16.msra.mxu0 %v1890
    %2010 = vmatprep.subr.bf16.mxu0 %v1889
    %2011 = vmatpush2.bf16.msra.mxu0 %v1888
    %2012 = vmatprep.subr.bf16.mxu0 %v1887
    %2013 = vmatpush2.bf16.msra.mxu0 %v1886
    %2014 = vmatprep.subr.bf16.mxu0 %v1885
    %2015 = vmatpush2.bf16.msra.mxu0 %v1884
    %2016 = vmatprep.subr.bf16.mxu0 %v1883
    %2017 = vmatpush2.bf16.msra.mxu0 %v1882
    %2018 = vmatprep.subr.bf16.mxu0 %v1881
    %2019 = vmatpush2.bf16.msra.mxu0 %v1880
    %2020 = vmatprep.subr.bf16.mxu0 %v1879
    %2021 = vmatpush2.bf16.msra.mxu0 %v1878
    %2022 = vmatprep.mubr.bf16.mxu0 %v1591
    %2023 = vmatmul.mubr.bf16.gmra.mxu0 %v1590
    %v2024 = vpop.f32.mrf.mxu0
    %v2025 = vadd.f32 %v1663, %v2024
    %v2026 = vpop.f32.mrf.mxu0
    %v2027 = vadd.f32 %v1667, %v2026
    %v2028 = vpop.f32.mrf.mxu0
    %v2029 = vpop.f32.mrf.mxu0
    %2030 = vdwg.mxu0
    %2031 = vmatprep.subr.bf16.mxu0 %v1909
    %2032 = vmatpush1.bf16.msra.mxu0 %v1908
    %2033 = vmatprep.subr.bf16.mxu0 %v1907
    %2034 = vmatpush1.bf16.msra.mxu0 %v1906
    %2035 = vmatprep.subr.bf16.mxu0 %v1905
    %2036 = vmatpush1.bf16.msra.mxu0 %v1904
    %2037 = vmatprep.subr.bf16.mxu0 %v1903
    %2038 = vmatpush1.bf16.msra.mxu0 %v1902
    %2039 = vmatprep.subr.bf16.mxu0 %v1901
    %2040 = vmatpush1.bf16.msra.mxu0 %v1900
    %2041 = vmatprep.subr.bf16.mxu0 %v1899
    %2042 = vmatpush1.bf16.msra.mxu0 %v1898
    %2043 = vmatprep.subr.bf16.mxu0 %v1897
    %2044 = vmatpush1.bf16.msra.mxu0 %v1896
    %2045 = vmatprep.subr.bf16.mxu0 %v1895
    %2046 = vmatpush1.bf16.msra.mxu0 %v1894
    %2047 = vmatprep.subr.bf16.mxu0 %v1925
    %2048 = vmatpush2.bf16.msra.mxu0 %v1924
    %2049 = vmatprep.subr.bf16.mxu0 %v1923
    %2050 = vmatpush2.bf16.msra.mxu0 %v1922
    %2051 = vmatprep.subr.bf16.mxu0 %v1921
    %2052 = vmatpush2.bf16.msra.mxu0 %v1920
    %2053 = vmatprep.subr.bf16.mxu0 %v1919
    %2054 = vmatpush2.bf16.msra.mxu0 %v1918
    %2055 = vmatprep.subr.bf16.mxu0 %v1917
    %2056 = vmatpush2.bf16.msra.mxu0 %v1916
    %2057 = vmatprep.subr.bf16.mxu0 %v1915
    %2058 = vmatpush2.bf16.msra.mxu0 %v1914
    %2059 = vmatprep.subr.bf16.mxu0 %v1913
    %2060 = vmatpush2.bf16.msra.mxu0 %v1912
    %2061 = vmatprep.subr.bf16.mxu0 %v1911
    %2062 = vmatpush2.bf16.msra.mxu0 %v1910
    %2063 = vmatprep.mubr.bf16.mxu0 %v1593
    %2064 = vmatmul.mubr.bf16.gmra.mxu0 %v1592
    %v2065 = vpop.f32.mrf.mxu0
    %v2066 = vadd.f32 %v2025, %v2065
    %v2067 = vpop.f32.mrf.mxu0
    %v2068 = vadd.f32 %v2027, %v2067
    %v2069 = vpop.f32.mrf.mxu0
    %v2070 = vpop.f32.mrf.mxu0
    %2071 = vdwg.mxu0
    %v2072 = vmax.f32 %v2066, 0.0
    %v2073 = vmax.f32 %v2068, 0.0
    %v2074 = vpack.c.bf16 %v2072, %v2072
    %v2075 = vpack.c.bf16 %v2073, %v2073
    %v2076 = vld [vmem:[%s5] sm:$0xf]
    %v2077 = vld [vmem:[%s5 + $0x4] sm:$0xf]
    %v2078 = vld [vmem:[%s5 + $0x8] sm:$0xf]
    %v2079 = vld [vmem:[%s5 + $0xc] sm:$0xf]
    %v2080 = vld [vmem:[%s5 + $0x10] sm:$0xf]
    %v2081 = vld [vmem:[%s5 + $0x14] sm:$0xf]
    %v2082 = vld [vmem:[%s5 + $0x18] sm:$0xf]
    %v2083 = vld [vmem:[%s5 + $0x1c] sm:$0xf]
    %v2084 = vld [vmem:[%s5 + $0x20] sm:$0xf]
    %v2085 = vld [vmem:[%s5 + $0x24] sm:$0xf]
    %v2086 = vld [vmem:[%s5 + $0x28] sm:$0xf]
    %v2087 = vld [vmem:[%s5 + $0x2c] sm:$0xf]
    %v2088 = vld [vmem:[%s5 + $0x30] sm:$0xf]
    %v2089 = vld [vmem:[%s5 + $0x34] sm:$0xf]
    %v2090 = vld [vmem:[%s5 + $0x38] sm:$0xf]
    %v2091 = vld [vmem:[%s5 + $0x3c] sm:$0xf]
    %v2092 = vld [vmem:[%s5 + $0x40] sm:$0xf]
    %v2093 = vld [vmem:[%s5 + $0x44] sm:$0xf]
    %v2094 = vld [vmem:[%s5 + $0x48] sm:$0xf]
    %v2095 = vld [vmem:[%s5 + $0x4c] sm:$0xf]
    %v2096 = vld [vmem:[%s5 + $0x50] sm:$0xf]
    %v2097 = vld [vmem:[%s5 + $0x54] sm:$0xf]
    %v2098 = vld [vmem:[%s5 + $0x58] sm:$0xf]
    %v2099 = vld [vmem:[%s5 + $0x5c] sm:$0xf]
    %v2100 = vld [vmem:[%s5 + $0x60] sm:$0xf]
    %v2101 = vld [vmem:[%s5 + $0x64] sm:$0xf]
    %v2102 = vld [vmem:[%s5 + $0x68] sm:$0xf]
    %v2103 = vld [vmem:[%s5 + $0x6c] sm:$0xf]
    %v2104 = vld [vmem:[%s5 + $0x70] sm:$0xf]
    %v2105 = vld [vmem:[%s5 + $0x74] sm:$0xf]
    %v2106 = vld [vmem:[%s5 + $0x78] sm:$0xf]
    %v2107 = vld [vmem:[%s5 + $0x7c] sm:$0xf]
    %v2108 = vld [vmem:[%s6] sm:$0x1]
    %v2110 = vlaneseq
    %v2111 = vshrl.u32 %v2110, 7
    %v2112 = vsub.s32 0, %v2111
    %v2113 = vrot.slane %v2108, %v2112
    %v2147 = vunpack.c.l.b16 %v2076
    %v2148 = vunpack.c.l.b16 %v2077
    %v2149 = vunpack.c.l.b16 %v2078
    %v2150 = vunpack.c.l.b16 %v2079
    %v2151 = vunpack.c.l.b16 %v2080
    %v2152 = vunpack.c.l.b16 %v2081
    %v2153 = vunpack.c.l.b16 %v2082
    %v2154 = vunpack.c.l.b16 %v2083
    %v2155 = vunpack.c.l.b16 %v2084
    %v2156 = vunpack.c.l.b16 %v2085
    %v2157 = vunpack.c.l.b16 %v2086
    %v2158 = vunpack.c.l.b16 %v2087
    %v2159 = vunpack.c.l.b16 %v2088
    %v2160 = vunpack.c.l.b16 %v2089
    %v2161 = vunpack.c.l.b16 %v2090
    %v2162 = vunpack.c.l.b16 %v2091
    %v2163 = vunpack.c.l.b16 %v2092
    %v2164 = vunpack.c.l.b16 %v2093
    %v2165 = vunpack.c.l.b16 %v2094
    %v2166 = vunpack.c.l.b16 %v2095
    %v2167 = vunpack.c.l.b16 %v2096
    %v2168 = vunpack.c.l.b16 %v2097
    %v2169 = vunpack.c.l.b16 %v2098
    %v2170 = vunpack.c.l.b16 %v2099
    %v2171 = vunpack.c.l.b16 %v2100
    %v2172 = vunpack.c.l.b16 %v2101
    %v2173 = vunpack.c.l.b16 %v2102
    %v2174 = vunpack.c.l.b16 %v2103
    %v2175 = vunpack.c.l.b16 %v2104
    %v2176 = vunpack.c.l.b16 %v2105
    %v2177 = vunpack.c.l.b16 %v2106
    %v2178 = vunpack.c.l.b16 %v2107
    %v2179 = vpack.c.b16 %v2148, %v2147
    %v2180 = vpack.c.b16 %v2150, %v2149
    %v2181 = vpack.c.b16 %v2152, %v2151
    %v2182 = vpack.c.b16 %v2154, %v2153
    %v2183 = vpack.c.b16 %v2156, %v2155
    %v2184 = vpack.c.b16 %v2158, %v2157
    %v2185 = vpack.c.b16 %v2160, %v2159
    %v2186 = vpack.c.b16 %v2162, %v2161
    %v2187 = vpack.c.b16 %v2164, %v2163
    %v2188 = vpack.c.b16 %v2166, %v2165
    %v2189 = vpack.c.b16 %v2168, %v2167
    %v2190 = vpack.c.b16 %v2170, %v2169
    %v2191 = vpack.c.b16 %v2172, %v2171
    %v2192 = vpack.c.b16 %v2174, %v2173
    %v2193 = vpack.c.b16 %v2176, %v2175
    %v2194 = vpack.c.b16 %v2178, %v2177
    %2211 = vmatprep.subr.bf16.mxu0 0
    %2212 = vmatpush1.bf16.msra.mxu0 %v2186
    %2213 = vmatprep.subr.bf16.mxu0 0
    %2214 = vmatpush1.bf16.msra.mxu0 %v2185
    %2215 = vmatprep.subr.bf16.mxu0 0
    %2216 = vmatpush1.bf16.msra.mxu0 %v2184
    %2217 = vmatprep.subr.bf16.mxu0 0
    %2218 = vmatpush1.bf16.msra.mxu0 %v2183
    %2219 = vmatprep.subr.bf16.mxu0 0
    %2220 = vmatpush1.bf16.msra.mxu0 %v2182
    %2221 = vmatprep.subr.bf16.mxu0 0
    %2222 = vmatpush1.bf16.msra.mxu0 %v2181
    %2223 = vmatprep.subr.bf16.mxu0 0
    %2224 = vmatpush1.bf16.msra.mxu0 %v2180
    %2225 = vmatprep.subr.bf16.mxu0 0
    %2226 = vmatpush1.bf16.msra.mxu0 %v2179
    %2227 = vmatprep.subr.bf16.mxu0 0
    %2228 = vmatpush2.bf16.msra.mxu0 %v2194
    %2229 = vmatprep.subr.bf16.mxu0 0
    %2230 = vmatpush2.bf16.msra.mxu0 %v2193
    %2231 = vmatprep.subr.bf16.mxu0 0
    %2232 = vmatpush2.bf16.msra.mxu0 %v2192
    %2233 = vmatprep.subr.bf16.mxu0 0
    %2234 = vmatpush2.bf16.msra.mxu0 %v2191
    %2235 = vmatprep.subr.bf16.mxu0 0
    %2236 = vmatpush2.bf16.msra.mxu0 %v2190
    %2237 = vmatprep.subr.bf16.mxu0 0
    %2238 = vmatpush2.bf16.msra.mxu0 %v2189
    %2239 = vmatprep.subr.bf16.mxu0 0
    %2240 = vmatpush2.bf16.msra.mxu0 %v2188
    %2241 = vmatprep.subr.bf16.mxu0 0
    %2242 = vmatpush2.bf16.msra.mxu0 %v2187
    %2243 = vmatprep.mubr.bf16.mxu0 %v2075
    %2244 = vmatmul.mubr.bf16.gmra.mxu0 %v2074
    %v2245 = vpop.f32.mrf.mxu0
    %v2246 = vadd.f32 %v2113, %v2245
    %v2247 = vpop.f32.mrf.mxu0
    %v2248 = vpop.f32.mrf.mxu0
    %v2249 = vpop.f32.mrf.mxu0
    %2250 = vdwg.mxu0
    %2251 = vst [vmem:[#allocation5] sm:$0xff] %v2246
    // Predicated region
    $region34: #{mnist_classifier_forward.1} parent=1 // pred_check
      _
    $region35: #{mnist_classifier_forward.1} parent=1 // pred_check_branch
      %2253 = sbr.rel (0) target = $region37
    $region36: #{mnist_classifier_forward.1} parent=1 // pred_region
      %s2255 = ssub.s32 128, 128
      %2256 = vsyncadd [#allocation4], %s2255
      %s2258 = sshll.u32 [#allocation5], 4
      %s2259 = int_to_ptr.vmem [resolvable:$true] %s2258
      %2261 = dma.vmem_to_hbm [thread:$0]  %s2259, 128, %s7, [#allocation4]
    $region37: #{mnist_classifier_forward.1} parent=1 // pred_fallthru
      _
    // Predicated region
    $region38: #{mnist_classifier_forward.1} parent=1 // pred_check
      _
    $region39: #{mnist_classifier_forward.1} parent=1 // pred_check_branch
      %2263 = sbr.rel (0) target = $region41
    $region40: #{mnist_classifier_forward.1} parent=1 // pred_region
      %2264 = dma.done [#allocation4], 128
    $region41: #{mnist_classifier_forward.1} parent=1 // pred_fallthru
      _
    %2265 = vsyncpa [#allocation3], 1
    %2266 = vsyncpa [#allocation4], 1

</llo_original>
